<compile_context>
chip_gen: v5e
topology: v5e:2x2
jax: 0.10.0
libtpu: 0.0.40
codegen_flags: <defaults>
</compile_context>

<pallas_src>
import functools

import jax
import jax.numpy as jnp
from jax.experimental import pallas as pl
from jax.experimental.pallas import tpu as pltpu

IN_FEATURES = 1 * 32 * 64          # 2048
HIDDEN = 256
OUT_CLASSES = 100
OUT_PADDED = 128                   # lane-dense fc2 width
NEG_PAD = -1e30                    # padded-logit bias -> vanishes in log_softmax


def _cdiv(a, b):
    return -(-a // b)


def _round_up(n, m):
    return _cdiv(n, m) * m


def _num_tensorcores():
    """Best-effort TensorCore count behind one JAX device (2 on v7x/v5p/v4)."""
    try:
        kind = jax.devices()[0].device_kind.lower()
    except Exception:
        return 1
    return 2 if any(tag in kind for tag in ("v7", "v5p", "v4")) else 1


def _two_layer_kernel(x_ref, w1_ref, b1_ref, w2_ref, b2_ref, o_ref):
    # x_ref: (TM, 2048) bf16   w1_ref: (2048, 256) bf16   b1_ref: (1, 256) f32
    # w2_ref: (256, 128) bf16  b2_ref: (1, 128) f32       o_ref: (TM, 128) f32

    # fc1 (bf16 MXU, f32 accumulate) — x arrives already in bf16, no cast here.
    h = jnp.dot(x_ref[...], w1_ref[...],
                preferred_element_type=jnp.float32) + b1_ref[...]
    # sigmoid via a single EUP tanh (exact identity, no VPU divide); f32 math.
    h = 0.5 * jnp.tanh(0.5 * h) + 0.5

    # fc2 (bf16 MXU, f32 accumulate); padded columns carry bias -1e30.
    logits = jnp.dot(h.astype(jnp.bfloat16), w2_ref[...],
                     preferred_element_type=jnp.float32) + b2_ref[...]

    # log_softmax over the lane-dense 128-wide logits; padded lanes are ~-1e30
    # so exp() underflows to exactly 0 and they never win the max.
    m = jnp.max(logits, axis=-1, keepdims=True)
    shifted = logits - m
    lse = jnp.log(jnp.sum(jnp.exp(shifted), axis=-1, keepdims=True))
    o_ref[...] = shifted - lse


def prepare_params(w1, b1, w2, b2):
    """One-time packing of PyTorch-layout params for the kernel.

    w1: (256, 2048), b1: (256,), w2: (100, 256), b2: (100,)  (nn.Linear layout)
    Returns (w1_io bf16 (2048,256), b1_row f32 (1,256),
             w2_io bf16 (256,128) zero-padded, b2_row f32 (1,128) -1e30-padded).
    """
    w1_io = jnp.transpose(w1).astype(jnp.bfloat16)                       # (2048, 256)
    b1_row = b1.reshape(1, HIDDEN).astype(jnp.float32)
    w2_io = jnp.zeros((HIDDEN, OUT_PADDED), jnp.bfloat16)
    w2_io = w2_io.at[:, :OUT_CLASSES].set(jnp.transpose(w2).astype(jnp.bfloat16))
    b2_row = jnp.full((1, OUT_PADDED), NEG_PAD, jnp.float32)
    b2_row = b2_row.at[:, :OUT_CLASSES].set(b2.astype(jnp.float32))
    return w1_io, b1_row, w2_io, b2_row


@functools.partial(jax.jit, static_argnames=("tm",))
def two_layer_model_forward(x_nchw, w1_io, b1_row, w2_io, b2_row, *, tm=1024):
    """Pallas forward pass.

    Args:
      x_nchw: (B, 1, 32, 64) float32
      w1_io, b1_row, w2_io, b2_row: output of prepare_params()
      tm: max batch tile (rows per grid step).
    Returns:
      (B, 100) float32 log-probabilities (matches torch.log_softmax output).
    """
    B = x_nchw.shape[0]
    # Flatten exactly like torch .view, then cast to bf16: this halves the
    # dominant HBM stream.  allow_input_fusion[0] below lets XLA fuse this
    # producer into the pallas_call input rather than writing a second copy.
    x = x_nchw.reshape(B, IN_FEATURES).astype(jnp.bfloat16)

    # Balanced batch tiles: just enough tiles to cover B at <= tm rows each;
    # on dual-TensorCore chips force >= 2 tiles so the "parallel" axis shards
    # across both cores.  TM rounded to 16 rows (native bf16 sublane tile).
    num_tiles = _cdiv(B, tm)
    cores = _num_tensorcores()
    if cores > 1 and B >= 16 * cores:
        num_tiles = max(num_tiles, cores)
    TM = _round_up(_cdiv(B, num_tiles), 16)
    Bp = TM * num_tiles
    if Bp != B:
        x = jnp.pad(x, ((0, Bp - B), (0, 0)))

    cost = pl.CostEstimate(
        flops=2 * Bp * IN_FEATURES * HIDDEN + 2 * Bp * HIDDEN * OUT_PADDED,
        transcendentals=Bp * (HIDDEN + OUT_PADDED),
        bytes_accessed=(x.size * 2                       # bf16 x stream
                        + w1_io.size * 2 + w2_io.size * 2
                        + b1_row.size * 4 + b2_row.size * 4
                        + Bp * OUT_PADDED * 4),          # f32 output
    )

    out = pl.pallas_call(
        _two_layer_kernel,
        out_shape=jax.ShapeDtypeStruct((Bp, OUT_PADDED), jnp.float32),
        grid=(num_tiles,),
        in_specs=[
            pl.BlockSpec((TM, IN_FEATURES), lambda i: (i, 0)),        # x tile (pipelined)
            pl.BlockSpec((IN_FEATURES, HIDDEN), lambda i: (0, 0)),    # w1 (VMEM-resident)
            pl.BlockSpec((1, HIDDEN), lambda i: (0, 0)),              # b1
            pl.BlockSpec((HIDDEN, OUT_PADDED), lambda i: (0, 0)),     # w2 (VMEM-resident)
            pl.BlockSpec((1, OUT_PADDED), lambda i: (0, 0)),          # b2
        ],
        out_specs=pl.BlockSpec((TM, OUT_PADDED), lambda i: (i, 0)),
        compiler_params=pltpu.CompilerParams(
            dimension_semantics=("parallel",),
            allow_input_fusion=[True, False, False, False, False],
        ),
        cost_estimate=cost,
    )(x, w1_io, b1_row, w2_io, b2_row)

    # Keep the module's (B, 100) f32 semantics; consumers that can take the
    # padded (Bp, 128) slab / bf16 could skip this slice for a few % more.
    return out[:B, :OUT_CLASSES]


def init_params(key):
    """nn.Linear default init: U(-1/sqrt(fan_in), 1/sqrt(fan_in)), PyTorch layout."""
    k1, k2, k3, k4 = jax.random.split(key, 4)
    bound1 = 1.0 / (IN_FEATURES ** 0.5)
    bound2 = 1.0 / (HIDDEN ** 0.5)
    w1 = jax.random.uniform(k1, (HIDDEN, IN_FEATURES), jnp.float32, -bound1, bound1)
    b1 = jax.random.uniform(k2, (HIDDEN,), jnp.float32, -bound1, bound1)
    w2 = jax.random.uniform(k3, (OUT_CLASSES, HIDDEN), jnp.float32, -bound2, bound2)
    b2 = jax.random.uniform(k4, (OUT_CLASSES,), jnp.float32, -bound2, bound2)
    return w1, b1, w2, b2


def _reference_f32(x_nchw, w1, b1, w2, b2):
    """Exact f32 replica of the PyTorch forward (loose check vs bf16 kernel)."""
    x = x_nchw.reshape(x_nchw.shape[0], -1)
    h = jax.nn.sigmoid(x @ w1.T + b1)
    logits = h @ w2.T + b2
    return jax.nn.log_softmax(logits, axis=1)


def _reference_bf16_matched(x_nchw, packed):
    """Mirrors the kernel's bf16 casts for a tight numerical check."""
    w1_io, b1_row, w2_io, b2_row = packed
    x = x_nchw.reshape(x_nchw.shape[0], -1).astype(jnp.bfloat16).astype(jnp.float32)
    h = x @ w1_io.astype(jnp.float32) + b1_row
    h = 0.5 * jnp.tanh(0.5 * h) + 0.5
    h = h.astype(jnp.bfloat16).astype(jnp.float32)
    logits = h @ w2_io.astype(jnp.float32) + b2_row
    return jax.nn.log_softmax(logits, axis=-1)[:, :OUT_CLASSES]


if __name__ == "__main__":
    key = jax.random.PRNGKey(0)
    kx1, kx2, kp = jax.random.split(key, 3)

    w1, b1, w2, b2 = init_params(kp)
    packed = prepare_params(w1, b1, w2, b2)      # one-time packing, no per-call transpose

    # Case 1: small batch, single grid step (default tm).
    B1 = 8
    x1 = jax.random.normal(kx1, (B1, 1, 32, 64), dtype=jnp.float32)
    out1 = jax.block_until_ready(two_layer_model_forward(x1, *packed))
    assert out1.shape == (B1, OUT_CLASSES)
    assert bool(jnp.all(jnp.isfinite(out1))), "non-finite outputs (case 1)"
    assert jnp.allclose(out1, _reference_bf16_matched(x1, packed),
                        atol=2e-3, rtol=2e-3), "mismatch vs bf16-matched ref (case 1)"
    assert jnp.allclose(out1, _reference_f32(x1, w1, b1, w2, b2),
                        atol=5e-2, rtol=5e-2), "mismatch vs f32 reference (case 1)"

    # Case 2: ragged batch with a small tile -> multi-step grid + row padding.
    B2 = 20
    x2 = jax.random.normal(kx2, (B2, 1, 32, 64), dtype=jnp.float32)
    out2 = jax.block_until_ready(two_layer_model_forward(x2, *packed, tm=16))
    assert out2.shape == (B2, OUT_CLASSES)
    assert bool(jnp.all(jnp.isfinite(out2))), "non-finite outputs (case 2)"
    assert jnp.allclose(out2, _reference_bf16_matched(x2, packed),
                        atol=2e-3, rtol=2e-3), "mismatch vs bf16-matched ref (case 2)"
    assert jnp.allclose(out2, _reference_f32(x2, w1, b1, w2, b2),
                        atol=5e-2, rtol=5e-2), "mismatch vs f32 reference (case 2)"

    print("KERNEL_OK")
</pallas_src>

<mosaic_0001>
module attributes {stable_mosaic.version = 11 : i64} {
  func.func @_two_layer_kernel(%arg0: i32, %arg1: memref<16x2048xbf16, #tpu.memory_space<vmem>>, %arg2: memref<2048x256xbf16, #tpu.memory_space<vmem>>, %arg3: memref<1x256xf32, #tpu.memory_space<vmem>>, %arg4: memref<256x128xbf16, #tpu.memory_space<vmem>>, %arg5: memref<1x128xf32, #tpu.memory_space<vmem>>, %arg6: memref<16x128xf32, #tpu.memory_space<vmem>>) attributes {dimension_semantics = [#tpu.dimension_semantics<parallel>], iteration_bounds = array<i64: 1>, scalar_prefetch = 0 : i64, scratch_operands = 0 : i64, tpu.core_type = #tpu.core_type<tc>, window_params = [{transform_indices = @transform_0, window_bounds = array<i64: 16, 2048>}, {pipeline_mode = #tpu.pipeline_mode<synchronous>, transform_indices = @transform_1, window_bounds = array<i64: 2048, 256>}, {pipeline_mode = #tpu.pipeline_mode<synchronous>, transform_indices = @transform_2, window_bounds = array<i64: 1, 256>}, {pipeline_mode = #tpu.pipeline_mode<synchronous>, transform_indices = @transform_3, window_bounds = array<i64: 256, 128>}, {pipeline_mode = #tpu.pipeline_mode<synchronous>, transform_indices = @transform_4, window_bounds = array<i64: 1, 128>}, {transform_indices = @transform_5, window_bounds = array<i64: 16, 128>}]} {
    %c0 = arith.constant 0 : index
    %c0_0 = arith.constant 0 : index
    %0 = vector.load %arg1[%c0, %c0_0] : memref<16x2048xbf16, #tpu.memory_space<vmem>>, vector<16x2048xbf16>
    %c0_1 = arith.constant 0 : index
    %c0_2 = arith.constant 0 : index
    %1 = vector.load %arg2[%c0_1, %c0_2] : memref<2048x256xbf16, #tpu.memory_space<vmem>>, vector<2048x256xbf16>
    %cst = arith.constant dense<0.000000e+00> : vector<16x256xf32>
    %2 = tpu.matmul %0, %1, %cst {dimension_numbers = #tpu.dot_dimension_numbers<[1], [0], [0], [1], [0, 0, 1, 1], [], []>} : vector<16x2048xbf16>, vector<2048x256xbf16>, vector<16x256xf32> -> vector<16x256xf32>
    %c0_3 = arith.constant 0 : index
    %c0_4 = arith.constant 0 : index
    %3 = vector.load %arg3[%c0_3, %c0_4] : memref<1x256xf32, #tpu.memory_space<vmem>>, vector<1x256xf32>
    %4 = vector.broadcast %3 : vector<1x256xf32> to vector<16x256xf32>
    %5 = arith.addf %2, %4 : vector<16x256xf32>
    %cst_5 = arith.constant 5.000000e-01 : f32
    %6 = vector.broadcast %cst_5 : f32 to vector<16x256xf32>
    %7 = arith.mulf %6, %5 : vector<16x256xf32>
    %8 = math.tanh %7 : vector<16x256xf32>
    %cst_6 = arith.constant 5.000000e-01 : f32
    %9 = vector.broadcast %cst_6 : f32 to vector<16x256xf32>
    %10 = arith.mulf %9, %8 : vector<16x256xf32>
    %cst_7 = arith.constant 5.000000e-01 : f32
    %11 = vector.broadcast %cst_7 : f32 to vector<16x256xf32>
    %12 = arith.addf %10, %11 : vector<16x256xf32>
    %13 = arith.truncf %12 : vector<16x256xf32> to vector<16x256xbf16>
    %c0_8 = arith.constant 0 : index
    %c0_9 = arith.constant 0 : index
    %14 = vector.load %arg4[%c0_8, %c0_9] : memref<256x128xbf16, #tpu.memory_space<vmem>>, vector<256x128xbf16>
    %cst_10 = arith.constant dense<0.000000e+00> : vector<16x128xf32>
    %15 = tpu.matmul %13, %14, %cst_10 {dimension_numbers = #tpu.dot_dimension_numbers<[1], [0], [0], [1], [0, 0, 1, 1], [], []>} : vector<16x256xbf16>, vector<256x128xbf16>, vector<16x128xf32> -> vector<16x128xf32>
    %c0_11 = arith.constant 0 : index
    %c0_12 = arith.constant 0 : index
    %16 = vector.load %arg5[%c0_11, %c0_12] : memref<1x128xf32, #tpu.memory_space<vmem>>, vector<1x128xf32>
    %17 = vector.broadcast %16 : vector<1x128xf32> to vector<16x128xf32>
    %18 = arith.addf %15, %17 : vector<16x128xf32>
    %cst_13 = arith.constant dense<0xFF800000> : vector<16xf32>
    %19 = vector.multi_reduction <maximumf>, %18, %cst_13 [1] : vector<16x128xf32> to vector<16xf32>
    %20 = vector.shape_cast %19 : vector<16xf32> to vector<16x1xf32>
    %21 = vector.broadcast %20 : vector<16x1xf32> to vector<16x128xf32>
    %22 = arith.subf %18, %21 : vector<16x128xf32>
    %23 = math.exp %22 : vector<16x128xf32>
    %cst_14 = arith.constant dense<0.000000e+00> : vector<16xf32>
    %24 = vector.multi_reduction <add>, %23, %cst_14 [1] : vector<16x128xf32> to vector<16xf32>
    %25 = vector.shape_cast %24 : vector<16xf32> to vector<16x1xf32>
    %26 = math.log %25 : vector<16x1xf32>
    %27 = vector.broadcast %26 : vector<16x1xf32> to vector<16x128xf32>
    %28 = arith.subf %22, %27 : vector<16x128xf32>
    %c0_15 = arith.constant 0 : index
    %c0_16 = arith.constant 0 : index
    %29 = vector.load %arg6[%c0_15, %c0_16] : memref<16x128xf32, #tpu.memory_space<vmem>>, vector<16x128xf32>
    tpu.vector_store %arg6[%c0_15, %c0_16], %28 {strides = array<i32>} : memref<16x128xf32, #tpu.memory_space<vmem>>, vector<16x128xf32>,
    return
  }
  func.func @transform_0(%arg0: i32) -> (i32, i32) {
    %c0_i32 = arith.constant 0 : i32
    %c0_i32_0 = arith.constant 0 : i32
    return %arg0, %c0_i32 : i32, i32
  }
  func.func @transform_1(%arg0: i32) -> (i32, i32) {
    %c0_i32 = arith.constant 0 : i32
    %c0_i32_0 = arith.constant 0 : i32
    %c0_i32_1 = arith.constant 0 : i32
    return %c0_i32, %c0_i32_0 : i32, i32
  }
  func.func @transform_2(%arg0: i32) -> (i32, i32) {
    %c0_i32 = arith.constant 0 : i32
    %c0_i32_0 = arith.constant 0 : i32
    %c0_i32_1 = arith.constant 0 : i32
    return %c0_i32, %c0_i32_0 : i32, i32
  }
  func.func @transform_3(%arg0: i32) -> (i32, i32) {
    %c0_i32 = arith.constant 0 : i32
    %c0_i32_0 = arith.constant 0 : i32
    %c0_i32_1 = arith.constant 0 : i32
    return %c0_i32, %c0_i32_0 : i32, i32
  }
  func.func @transform_4(%arg0: i32) -> (i32, i32) {
    %c0_i32 = arith.constant 0 : i32
    %c0_i32_0 = arith.constant 0 : i32
    %c0_i32_1 = arith.constant 0 : i32
    return %c0_i32, %c0_i32_0 : i32, i32
  }
  func.func @transform_5(%arg0: i32) -> (i32, i32) {
    %c0_i32 = arith.constant 0 : i32
    %c0_i32_0 = arith.constant 0 : i32
    return %arg0, %c0_i32 : i32, i32
  }
}

</mosaic_0001>

<llo_original>
// kernel: two_layer_model_forward.2
$region0: #{two_layer_model_forward.2}
  #allocation0 [shape = 'u32[]', space=smem, size = 0x4, offset = 0x4, fixed_abs, tag = 'smem constant byte address 0x4 - core index']
  #allocation1 [shape = 'u32[72,128]{1,0:T(1,128)}', space=vmem, size = 0x9000, scoped, tag = 'internal scratch']
  #allocation2 [shape = 'u32[2048]{0}', space=vmem, size = 0x2000, scoped, tag = 'scoped memory for two_layer_model_forward.2']
  #allocation3 [shape = 'u32[2048]{0}', space=vmem, size = 0x2000, scoped, tag = 'scoped memory for two_layer_model_forward.2']
  #allocation4 [shape = 'u32[2048]{0}', space=vmem, size = 0x2000, scoped, tag = 'scoped memory for two_layer_model_forward.2']
  #allocation5 [shape = 'u32[2048]{0}', space=vmem, size = 0x2000, scoped, tag = 'scoped memory for two_layer_model_forward.2']
  #allocation6 [shape = 'u32[2048]{0}', space=vmem, size = 0x2000, scoped, tag = 'scoped memory for two_layer_model_forward.2']
  %s0 = inlined_call_operand.hbm [shape: bf16[2048,256], index: 0, kind: input, shape index: {}]
  %s1 = inlined_call_operand.vmem [shape: f32[1,256], index: 1, kind: input, shape index: {}]
  %s2 = inlined_call_operand.vmem [shape: bf16[256,128], index: 2, kind: input, shape index: {}]
  %s3 = inlined_call_operand.vmem [shape: f32[1,128], index: 3, kind: input, shape index: {}]
  %s4 = inlined_call_operand.vmem [shape: bf16[8,2048], index: 4, kind: input, shape index: {}]
  %s5 = inlined_call_operand.<no memory space> [shape: bf16[], index: 5, kind: input, shape index: {}]
  %s6 = inlined_call_operand.vmem [shape: f32[16,128], index: 6, kind: output, shape index: {}]
  %s7 = sld [smem:[#allocation0]]
  $region34: #{two_layer_model_forward.2} parent=0
    _
  %s9 = ssub.s32 1, %s7
  %s10 = scalar_select 0, %s9, %s7
  %v11 = vstv %s5
  %v12 = vunpack.i.l.bf16 %v11
  %v14 = vunpack.i.h.bf16 %v11
  $region1: #{two_layer_model_forward.2} parent=0
    #allocation7 [shape = 'u8[1048576]{0}', space=vmem, size = 0x100000, scoped, tag = 'input window, operand 1, single buffered']
    #allocation8 [shape = 's32[1]{0}', space=sflag, size = 0x4, scoped, tag = 'scoped memory for two_layer_model_forward.2']
    #allocation9 [shape = 'u8[65536]{0}', space=vmem, size = 0x10000, dematerialized = true, scoped, tag = 'FusionAdapter Buffer %fusion.1 = bf16[16,2048]{1,0:T(8,128)(2,1)} fusion(%param_4.1, %param_5), kind=kLoop, calls=%fused_computation.1.clone, metadata={op_name="jit(two_layer_model_forward)/jit(_pad)/pad" stack_frame_id=8}']
    %16 = vsyncpa [#allocation8], 0
    // Predicated region
    $region2: #{two_layer_model_forward.2} parent=1 // pred_check
      _
    $region3: #{two_layer_model_forward.2} parent=1 // pred_check_branch
      %18 = sbr.rel (0) target = $region5
    $region4: #{two_layer_model_forward.2} parent=1 // pred_region
      _
    $region5: #{two_layer_model_forward.2} parent=1 // pred_fallthru
      _
    // Predicated region
    $region6: #{two_layer_model_forward.2} parent=1 // pred_check
      _
    $region7: #{two_layer_model_forward.2} parent=1 // pred_check_branch
      %20 = sbr.rel (0) target = $region9
    $region8: #{two_layer_model_forward.2} parent=1 // pred_region
      %22 = vsyncadd [#allocation8], 0
      %s23 = sshll.u32 %s0, 4
      %s24 = int_to_ptr.hbm [resolvable:$true] %s23
      %s25 = sshll.u32 [#allocation7], 4
      %s26 = int_to_ptr.vmem [resolvable:$true] %s25
      %31 = dma.hbm_to_vmem [thread:$0]  %s24, 32768, %s26, [#allocation8], 128, 128, 8
    $region9: #{two_layer_model_forward.2} parent=1 // pred_fallthru
      _
    // Predicated region
    $region10: #{two_layer_model_forward.2} parent=1 // pred_check
      _
    $region11: #{two_layer_model_forward.2} parent=1 // pred_check_branch
      %33 = sbr.rel (0) target = $region13
    $region12: #{two_layer_model_forward.2} parent=1 // pred_region
      _
    $region13: #{two_layer_model_forward.2} parent=1 // pred_fallthru
      _
    // Predicated region
    $region14: #{two_layer_model_forward.2} parent=1 // pred_check
      _
    $region15: #{two_layer_model_forward.2} parent=1 // pred_check_branch
      %35 = sbr.rel (0) target = $region17
    $region16: #{two_layer_model_forward.2} parent=1 // pred_region
      _
    $region17: #{two_layer_model_forward.2} parent=1 // pred_fallthru
      _
    // Predicated region
    $region18: #{two_layer_model_forward.2} parent=1 // pred_check
      _
    $region19: #{two_layer_model_forward.2} parent=1 // pred_check_branch
      %37 = sbr.rel (0) target = $region21
    $region20: #{two_layer_model_forward.2} parent=1 // pred_region
      _
    $region21: #{two_layer_model_forward.2} parent=1 // pred_fallthru
      _
    // Predicated region
    $region22: #{two_layer_model_forward.2} parent=1 // pred_check
      _
    $region23: #{two_layer_model_forward.2} parent=1 // pred_check_branch
      %39 = sbr.rel (0) target = $region25
    $region24: #{two_layer_model_forward.2} parent=1 // pred_region
      %41 = dma.done [#allocation8], 32768
    $region25: #{two_layer_model_forward.2} parent=1 // pred_fallthru
      _
    %s43 = sor.u32 255, 127
    %s44 = sand.u32 %s43, 85
    %s45 = sshrl.u32 %s44, 1
    %s46 = sor.u32 %s44, %s45
    %s47 = sand.u32 51, %s46
    %s48 = sshrl.u32 %s47, 2
    %s49 = sor.u32 %s47, %s48
    %s50 = sand.u32 15, %s49
    %v51 = vld [vmem:[%s4] sm:%s50]
    %v52 = vunpack.c.l.bf16 %v51
    %v53 = vunpack.c.h.bf16 %v51
    %v54 = vpack.c.bf16 0.0, %v52
    %s56 = ssub.s32 16, 1
    %57 = vst [vmem:[#allocation9] sm:%s56] %v54
    %s58 = scalar_lea.vmem %s4, 4
    %s60 = sor.u32 255, 127
    %s61 = sand.u32 %s60, 85
    %s62 = sshrl.u32 %s61, 1
    %s63 = sor.u32 %s61, %s62
    %s64 = sand.u32 51, %s63
    %s65 = sshrl.u32 %s64, 2
    %s66 = sor.u32 %s64, %s65
    %s67 = sand.u32 15, %s66
    %v68 = vld [vmem:[%s58] sm:%s67]
    %v69 = vunpack.c.l.bf16 %v68
    %v70 = vunpack.c.h.bf16 %v68
    %s71 = scalar_lea.vmem [#allocation9], 4
    %v72 = vpack.c.bf16 0.0, %v69
    %s74 = ssub.s32 16, 1
    %75 = vst [vmem:[%s71] sm:%s74] %v72
    %s76 = scalar_lea.vmem %s4, 8
    %s78 = sor.u32 255, 127
    %s79 = sand.u32 %s78, 85
    %s80 = sshrl.u32 %s79, 1
    %s81 = sor.u32 %s79, %s80
    %s82 = sand.u32 51, %s81
    %s83 = sshrl.u32 %s82, 2
    %s84 = sor.u32 %s82, %s83
    %s85 = sand.u32 15, %s84
    %v86 = vld [vmem:[%s76] sm:%s85]
    %v87 = vunpack.c.l.bf16 %v86
    %v88 = vunpack.c.h.bf16 %v86
    %s89 = scalar_lea.vmem [#allocation9], 8
    %v90 = vpack.c.bf16 0.0, %v87
    %s92 = ssub.s32 16, 1
    %93 = vst [vmem:[%s89] sm:%s92] %v90
    %s94 = scalar_lea.vmem %s4, 12
    %s96 = sor.u32 255, 127
    %s97 = sand.u32 %s96, 85
    %s98 = sshrl.u32 %s97, 1
    %s99 = sor.u32 %s97, %s98
    %s100 = sand.u32 51, %s99
    %s101 = sshrl.u32 %s100, 2
    %s102 = sor.u32 %s100, %s101
    %s103 = sand.u32 15, %s102
    %v104 = vld [vmem:[%s94] sm:%s103]
    %v105 = vunpack.c.l.bf16 %v104
    %v106 = vunpack.c.h.bf16 %v104
    %s107 = scalar_lea.vmem [#allocation9], 12
    %v108 = vpack.c.bf16 0.0, %v105
    %s110 = ssub.s32 16, 1
    %111 = vst [vmem:[%s107] sm:%s110] %v108
    %s112 = scalar_lea.vmem %s4, 16
    %s114 = sor.u32 255, 127
    %s115 = sand.u32 %s114, 85
    %s116 = sshrl.u32 %s115, 1
    %s117 = sor.u32 %s115, %s116
    %s118 = sand.u32 51, %s117
    %s119 = sshrl.u32 %s118, 2
    %s120 = sor.u32 %s118, %s119
    %s121 = sand.u32 15, %s120
    %v122 = vld [vmem:[%s112] sm:%s121]
    %v123 = vunpack.c.l.bf16 %v122
    %v124 = vunpack.c.h.bf16 %v122
    %s125 = scalar_lea.vmem [#allocation9], 16
    %v126 = vpack.c.bf16 0.0, %v123
    %s128 = ssub.s32 16, 1
    %129 = vst [vmem:[%s125] sm:%s128] %v126
    %s130 = scalar_lea.vmem %s4, 20
    %s132 = sor.u32 255, 127
    %s133 = sand.u32 %s132, 85
    %s134 = sshrl.u32 %s133, 1
    %s135 = sor.u32 %s133, %s134
    %s136 = sand.u32 51, %s135
    %s137 = sshrl.u32 %s136, 2
    %s138 = sor.u32 %s136, %s137
    %s139 = sand.u32 15, %s138
    %v140 = vld [vmem:[%s130] sm:%s139]
    %v141 = vunpack.c.l.bf16 %v140
    %v142 = vunpack.c.h.bf16 %v140
    %s143 = scalar_lea.vmem [#allocation9], 20
    %v144 = vpack.c.bf16 0.0, %v141
    %s146 = ssub.s32 16, 1
    %147 = vst [vmem:[%s143] sm:%s146] %v144
    %s148 = scalar_lea.vmem %s4, 24
    %s150 = sor.u32 255, 127
    %s151 = sand.u32 %s150, 85
    %s152 = sshrl.u32 %s151, 1
    %s153 = sor.u32 %s151, %s152
    %s154 = sand.u32 51, %s153
    %s155 = sshrl.u32 %s154, 2
    %s156 = sor.u32 %s154, %s155
    %s157 = sand.u32 15, %s156
    %v158 = vld [vmem:[%s148] sm:%s157]
    %v159 = vunpack.c.l.bf16 %v158
    %v160 = vunpack.c.h.bf16 %v158
    %s161 = scalar_lea.vmem [#allocation9], 24
    %v162 = vpack.c.bf16 0.0, %v159
    %s164 = ssub.s32 16, 1
    %165 = vst [vmem:[%s161] sm:%s164] %v162
    %s166 = scalar_lea.vmem %s4, 28
    %s168 = sor.u32 255, 127
    %s169 = sand.u32 %s168, 85
    %s170 = sshrl.u32 %s169, 1
    %s171 = sor.u32 %s169, %s170
    %s172 = sand.u32 51, %s171
    %s173 = sshrl.u32 %s172, 2
    %s174 = sor.u32 %s172, %s173
    %s175 = sand.u32 15, %s174
    %v176 = vld [vmem:[%s166] sm:%s175]
    %v177 = vunpack.c.l.bf16 %v176
    %v178 = vunpack.c.h.bf16 %v176
    %s179 = scalar_lea.vmem [#allocation9], 28
    %v180 = vpack.c.bf16 0.0, %v177
    %s182 = ssub.s32 16, 1
    %183 = vst [vmem:[%s179] sm:%s182] %v180
    %s184 = scalar_lea.vmem %s4, 32
    %s186 = sor.u32 255, 127
    %s187 = sand.u32 %s186, 85
    %s188 = sshrl.u32 %s187, 1
    %s189 = sor.u32 %s187, %s188
    %s190 = sand.u32 51, %s189
    %s191 = sshrl.u32 %s190, 2
    %s192 = sor.u32 %s190, %s191
    %s193 = sand.u32 15, %s192
    %v194 = vld [vmem:[%s184] sm:%s193]
    %v195 = vunpack.c.l.bf16 %v194
    %v196 = vunpack.c.h.bf16 %v194
    %s197 = scalar_lea.vmem [#allocation9], 32
    %v198 = vpack.c.bf16 0.0, %v195
    %s200 = ssub.s32 16, 1
    %201 = vst [vmem:[%s197] sm:%s200] %v198
    %s202 = scalar_lea.vmem %s4, 36
    %s204 = sor.u32 255, 127
    %s205 = sand.u32 %s204, 85
    %s206 = sshrl.u32 %s205, 1
    %s207 = sor.u32 %s205, %s206
    %s208 = sand.u32 51, %s207
    %s209 = sshrl.u32 %s208, 2
    %s210 = sor.u32 %s208, %s209
    %s211 = sand.u32 15, %s210
    %v212 = vld [vmem:[%s202] sm:%s211]
    %v213 = vunpack.c.l.bf16 %v212
    %v214 = vunpack.c.h.bf16 %v212
    %s215 = scalar_lea.vmem [#allocation9], 36
    %v216 = vpack.c.bf16 0.0, %v213
    %s218 = ssub.s32 16, 1
    %219 = vst [vmem:[%s215] sm:%s218] %v216
    %s220 = scalar_lea.vmem %s4, 40
    %s222 = sor.u32 255, 127
    %s223 = sand.u32 %s222, 85
    %s224 = sshrl.u32 %s223, 1
    %s225 = sor.u32 %s223, %s224
    %s226 = sand.u32 51, %s225
    %s227 = sshrl.u32 %s226, 2
    %s228 = sor.u32 %s226, %s227
    %s229 = sand.u32 15, %s228
    %v230 = vld [vmem:[%s220] sm:%s229]
    %v231 = vunpack.c.l.bf16 %v230
    %v232 = vunpack.c.h.bf16 %v230
    %s233 = scalar_lea.vmem [#allocation9], 40
    %v234 = vpack.c.bf16 0.0, %v231
    %s236 = ssub.s32 16, 1
    %237 = vst [vmem:[%s233] sm:%s236] %v234
    %s238 = scalar_lea.vmem %s4, 44
    %s240 = sor.u32 255, 127
    %s241 = sand.u32 %s240, 85
    %s242 = sshrl.u32 %s241, 1
    %s243 = sor.u32 %s241, %s242
    %s244 = sand.u32 51, %s243
    %s245 = sshrl.u32 %s244, 2
    %s246 = sor.u32 %s244, %s245
    %s247 = sand.u32 15, %s246
    %v248 = vld [vmem:[%s238] sm:%s247]
    %v249 = vunpack.c.l.bf16 %v248
    %v250 = vunpack.c.h.bf16 %v248
    %s251 = scalar_lea.vmem [#allocation9], 44
    %v252 = vpack.c.bf16 0.0, %v249
    %s254 = ssub.s32 16, 1
    %255 = vst [vmem:[%s251] sm:%s254] %v252
    %s256 = scalar_lea.vmem %s4, 48
    %s258 = sor.u32 255, 127
    %s259 = sand.u32 %s258, 85
    %s260 = sshrl.u32 %s259, 1
    %s261 = sor.u32 %s259, %s260
    %s262 = sand.u32 51, %s261
    %s263 = sshrl.u32 %s262, 2
    %s264 = sor.u32 %s262, %s263
    %s265 = sand.u32 15, %s264
    %v266 = vld [vmem:[%s256] sm:%s265]
    %v267 = vunpack.c.l.bf16 %v266
    %v268 = vunpack.c.h.bf16 %v266
    %s269 = scalar_lea.vmem [#allocation9], 48
    %v270 = vpack.c.bf16 0.0, %v267
    %s272 = ssub.s32 16, 1
    %273 = vst [vmem:[%s269] sm:%s272] %v270
    %s274 = scalar_lea.vmem %s4, 52
    %s276 = sor.u32 255, 127
    %s277 = sand.u32 %s276, 85
    %s278 = sshrl.u32 %s277, 1
    %s279 = sor.u32 %s277, %s278
    %s280 = sand.u32 51, %s279
    %s281 = sshrl.u32 %s280, 2
    %s282 = sor.u32 %s280, %s281
    %s283 = sand.u32 15, %s282
    %v284 = vld [vmem:[%s274] sm:%s283]
    %v285 = vunpack.c.l.bf16 %v284
    %v286 = vunpack.c.h.bf16 %v284
    %s287 = scalar_lea.vmem [#allocation9], 52
    %v288 = vpack.c.bf16 0.0, %v285
    %s290 = ssub.s32 16, 1
    %291 = vst [vmem:[%s287] sm:%s290] %v288
    %s292 = scalar_lea.vmem %s4, 56
    %s294 = sor.u32 255, 127
    %s295 = sand.u32 %s294, 85
    %s296 = sshrl.u32 %s295, 1
    %s297 = sor.u32 %s295, %s296
    %s298 = sand.u32 51, %s297
    %s299 = sshrl.u32 %s298, 2
    %s300 = sor.u32 %s298, %s299
    %s301 = sand.u32 15, %s300
    %v302 = vld [vmem:[%s292] sm:%s301]
    %v303 = vunpack.c.l.bf16 %v302
    %v304 = vunpack.c.h.bf16 %v302
    %s305 = scalar_lea.vmem [#allocation9], 56
    %v306 = vpack.c.bf16 0.0, %v303
    %s308 = ssub.s32 16, 1
    %309 = vst [vmem:[%s305] sm:%s308] %v306
    %s310 = scalar_lea.vmem %s4, 60
    %s312 = sor.u32 255, 127
    %s313 = sand.u32 %s312, 85
    %s314 = sshrl.u32 %s313, 1
    %s315 = sor.u32 %s313, %s314
    %s316 = sand.u32 51, %s315
    %s317 = sshrl.u32 %s316, 2
    %s318 = sor.u32 %s316, %s317
    %s319 = sand.u32 15, %s318
    %v320 = vld [vmem:[%s310] sm:%s319]
    %v321 = vunpack.c.l.bf16 %v320
    %v322 = vunpack.c.h.bf16 %v320
    %s323 = scalar_lea.vmem [#allocation9], 60
    %v324 = vpack.c.bf16 0.0, %v321
    %s326 = ssub.s32 16, 1
    %327 = vst [vmem:[%s323] sm:%s326] %v324
    %s328 = scalar_lea.vmem [#allocation9], 64
    %v329 = vpack.c.bf16 0.0, %v12
    %s331 = ssub.s32 16, 1
    %332 = vst [vmem:[%s328] sm:%s331] %v329
    %s333 = scalar_lea.vmem [#allocation9], 68
    %v334 = vpack.c.bf16 0.0, %v12
    %s336 = ssub.s32 16, 1
    %337 = vst [vmem:[%s333] sm:%s336] %v334
    %s338 = scalar_lea.vmem [#allocation9], 72
    %v339 = vpack.c.bf16 0.0, %v12
    %s341 = ssub.s32 16, 1
    %342 = vst [vmem:[%s338] sm:%s341] %v339
    %s343 = scalar_lea.vmem [#allocation9], 76
    %v344 = vpack.c.bf16 0.0, %v12
    %s346 = ssub.s32 16, 1
    %347 = vst [vmem:[%s343] sm:%s346] %v344
    %s348 = scalar_lea.vmem [#allocation9], 80
    %v349 = vpack.c.bf16 0.0, %v12
    %s351 = ssub.s32 16, 1
    %352 = vst [vmem:[%s348] sm:%s351] %v349
    %s353 = scalar_lea.vmem [#allocation9], 84
    %v354 = vpack.c.bf16 0.0, %v12
    %s356 = ssub.s32 16, 1
    %357 = vst [vmem:[%s353] sm:%s356] %v354
    %s358 = scalar_lea.vmem [#allocation9], 88
    %v359 = vpack.c.bf16 0.0, %v12
    %s361 = ssub.s32 16, 1
    %362 = vst [vmem:[%s358] sm:%s361] %v359
    %s363 = scalar_lea.vmem [#allocation9], 92
    %v364 = vpack.c.bf16 0.0, %v12
    %s366 = ssub.s32 16, 1
    %367 = vst [vmem:[%s363] sm:%s366] %v364
    %s368 = scalar_lea.vmem [#allocation9], 96
    %v369 = vpack.c.bf16 0.0, %v12
    %s371 = ssub.s32 16, 1
    %372 = vst [vmem:[%s368] sm:%s371] %v369
    %s373 = scalar_lea.vmem [#allocation9], 100
    %v374 = vpack.c.bf16 0.0, %v12
    %s376 = ssub.s32 16, 1
    %377 = vst [vmem:[%s373] sm:%s376] %v374
    %s378 = scalar_lea.vmem [#allocation9], 104
    %v379 = vpack.c.bf16 0.0, %v12
    %s381 = ssub.s32 16, 1
    %382 = vst [vmem:[%s378] sm:%s381] %v379
    %s383 = scalar_lea.vmem [#allocation9], 108
    %v384 = vpack.c.bf16 0.0, %v12
    %s386 = ssub.s32 16, 1
    %387 = vst [vmem:[%s383] sm:%s386] %v384
    %s388 = scalar_lea.vmem [#allocation9], 112
    %v389 = vpack.c.bf16 0.0, %v12
    %s391 = ssub.s32 16, 1
    %392 = vst [vmem:[%s388] sm:%s391] %v389
    %s393 = scalar_lea.vmem [#allocation9], 116
    %v394 = vpack.c.bf16 0.0, %v12
    %s396 = ssub.s32 16, 1
    %397 = vst [vmem:[%s393] sm:%s396] %v394
    %s398 = scalar_lea.vmem [#allocation9], 120
    %v399 = vpack.c.bf16 0.0, %v12
    %s401 = ssub.s32 16, 1
    %402 = vst [vmem:[%s398] sm:%s401] %v399
    %s403 = scalar_lea.vmem [#allocation9], 124
    %v404 = vpack.c.bf16 0.0, %v12
    %s406 = ssub.s32 16, 1
    %407 = vst [vmem:[%s403] sm:%s406] %v404
    %v408 = vld [vmem:[#allocation9] sm:$0xff]
    %v409 = vld [vmem:[#allocation9 + $0x8] sm:$0xff]
    %v410 = vld [vmem:[#allocation9 + $0x10] sm:$0xff]
    %v411 = vld [vmem:[#allocation9 + $0x18] sm:$0xff]
    %v412 = vld [vmem:[#allocation9 + $0x20] sm:$0xff]
    %v413 = vld [vmem:[#allocation9 + $0x28] sm:$0xff]
    %v414 = vld [vmem:[#allocation9 + $0x30] sm:$0xff]
    %v415 = vld [vmem:[#allocation9 + $0x38] sm:$0xff]
    %v416 = vld [vmem:[#allocation9 + $0x40] sm:$0xff]
    %v417 = vld [vmem:[#allocation9 + $0x48] sm:$0xff]
    %v418 = vld [vmem:[#allocation9 + $0x50] sm:$0xff]
    %v419 = vld [vmem:[#allocation9 + $0x58] sm:$0xff]
    %v420 = vld [vmem:[#allocation9 + $0x60] sm:$0xff]
    %v421 = vld [vmem:[#allocation9 + $0x68] sm:$0xff]
    %v422 = vld [vmem:[#allocation9 + $0x70] sm:$0xff]
    %v423 = vld [vmem:[#allocation9 + $0x78] sm:$0xff]
    %v424 = vld [vmem:[#allocation7] sm:$0xff]
    %v425 = vld [vmem:[#allocation7 + $0x8] sm:$0xff]
    %v426 = vld [vmem:[#allocation7 + $0x10] sm:$0xff]
    %v427 = vld [vmem:[#allocation7 + $0x18] sm:$0xff]
    %v428 = vld [vmem:[#allocation7 + $0x20] sm:$0xff]
    %v429 = vld [vmem:[#allocation7 + $0x28] sm:$0xff]
    %v430 = vld [vmem:[#allocation7 + $0x30] sm:$0xff]
    %v431 = vld [vmem:[#allocation7 + $0x38] sm:$0xff]
    %v432 = vld [vmem:[#allocation7 + $0x40] sm:$0xff]
    %v433 = vld [vmem:[#allocation7 + $0x48] sm:$0xff]
    %v434 = vld [vmem:[#allocation7 + $0x50] sm:$0xff]
    %v435 = vld [vmem:[#allocation7 + $0x58] sm:$0xff]
    %v436 = vld [vmem:[#allocation7 + $0x60] sm:$0xff]
    %v437 = vld [vmem:[#allocation7 + $0x68] sm:$0xff]
    %v438 = vld [vmem:[#allocation7 + $0x70] sm:$0xff]
    %v439 = vld [vmem:[#allocation7 + $0x78] sm:$0xff]
    %v440 = vld [vmem:[#allocation7 + $0x80] sm:$0xff]
    %v441 = vld [vmem:[#allocation7 + $0x88] sm:$0xff]
    %v442 = vld [vmem:[#allocation7 + $0x90] sm:$0xff]
    %v443 = vld [vmem:[#allocation7 + $0x98] sm:$0xff]
    %v444 = vld [vmem:[#allocation7 + $0xa0] sm:$0xff]
    %v445 = vld [vmem:[#allocation7 + $0xa8] sm:$0xff]
    %v446 = vld [vmem:[#allocation7 + $0xb0] sm:$0xff]
    %v447 = vld [vmem:[#allocation7 + $0xb8] sm:$0xff]
    %v448 = vld [vmem:[#allocation7 + $0xc0] sm:$0xff]
    %v449 = vld [vmem:[#allocation7 + $0xc8] sm:$0xff]
    %v450 = vld [vmem:[#allocation7 + $0xd0] sm:$0xff]
    %v451 = vld [vmem:[#allocation7 + $0xd8] sm:$0xff]
    %v452 = vld [vmem:[#allocation7 + $0xe0] sm:$0xff]
    %v453 = vld [vmem:[#allocation7 + $0xe8] sm:$0xff]
    %v454 = vld [vmem:[#allocation7 + $0xf0] sm:$0xff]
    %v455 = vld [vmem:[#allocation7 + $0xf8] sm:$0xff]
    %v456 = vld [vmem:[#allocation7 + $0x100] sm:$0xff]
    %v457 = vld [vmem:[#allocation7 + $0x108] sm:$0xff]
    %v458 = vld [vmem:[#allocation7 + $0x110] sm:$0xff]
    %v459 = vld [vmem:[#allocation7 + $0x118] sm:$0xff]
    %v460 = vld [vmem:[#allocation7 + $0x120] sm:$0xff]
    %v461 = vld [vmem:[#allocation7 + $0x128] sm:$0xff]
    %v462 = vld [vmem:[#allocation7 + $0x130] sm:$0xff]
    %v463 = vld [vmem:[#allocation7 + $0x138] sm:$0xff]
    %v464 = vld [vmem:[#allocation7 + $0x140] sm:$0xff]
    %v465 = vld [vmem:[#allocation7 + $0x148] sm:$0xff]
    %v466 = vld [vmem:[#allocation7 + $0x150] sm:$0xff]
    %v467 = vld [vmem:[#allocation7 + $0x158] sm:$0xff]
    %v468 = vld [vmem:[#allocation7 + $0x160] sm:$0xff]
    %v469 = vld [vmem:[#allocation7 + $0x168] sm:$0xff]
    %v470 = vld [vmem:[#allocation7 + $0x170] sm:$0xff]
    %v471 = vld [vmem:[#allocation7 + $0x178] sm:$0xff]
    %v472 = vld [vmem:[#allocation7 + $0x180] sm:$0xff]
    %v473 = vld [vmem:[#allocation7 + $0x188] sm:$0xff]
    %v474 = vld [vmem:[#allocation7 + $0x190] sm:$0xff]
    %v475 = vld [vmem:[#allocation7 + $0x198] sm:$0xff]
    %v476 = vld [vmem:[#allocation7 + $0x1a0] sm:$0xff]
    %v477 = vld [vmem:[#allocation7 + $0x1a8] sm:$0xff]
    %v478 = vld [vmem:[#allocation7 + $0x1b0] sm:$0xff]
    %v479 = vld [vmem:[#allocation7 + $0x1b8] sm:$0xff]
    %v480 = vld [vmem:[#allocation7 + $0x1c0] sm:$0xff]
    %v481 = vld [vmem:[#allocation7 + $0x1c8] sm:$0xff]
    %v482 = vld [vmem:[#allocation7 + $0x1d0] sm:$0xff]
    %v483 = vld [vmem:[#allocation7 + $0x1d8] sm:$0xff]
    %v484 = vld [vmem:[#allocation7 + $0x1e0] sm:$0xff]
    %v485 = vld [vmem:[#allocation7 + $0x1e8] sm:$0xff]
    %v486 = vld [vmem:[#allocation7 + $0x1f0] sm:$0xff]
    %v487 = vld [vmem:[#allocation7 + $0x1f8] sm:$0xff]
    %v488 = vld [vmem:[#allocation7 + $0x200] sm:$0xff]
    %v489 = vld [vmem:[#allocation7 + $0x208] sm:$0xff]
    %v490 = vld [vmem:[#allocation7 + $0x210] sm:$0xff]
    %v491 = vld [vmem:[#allocation7 + $0x218] sm:$0xff]
    %v492 = vld [vmem:[#allocation7 + $0x220] sm:$0xff]
    %v493 = vld [vmem:[#allocation7 + $0x228] sm:$0xff]
    %v494 = vld [vmem:[#allocation7 + $0x230] sm:$0xff]
    %v495 = vld [vmem:[#allocation7 + $0x238] sm:$0xff]
    %v496 = vld [vmem:[#allocation7 + $0x240] sm:$0xff]
    %v497 = vld [vmem:[#allocation7 + $0x248] sm:$0xff]
    %v498 = vld [vmem:[#allocation7 + $0x250] sm:$0xff]
    %v499 = vld [vmem:[#allocation7 + $0x258] sm:$0xff]
    %v500 = vld [vmem:[#allocation7 + $0x260] sm:$0xff]
    %v501 = vld [vmem:[#allocation7 + $0x268] sm:$0xff]
    %v502 = vld [vmem:[#allocation7 + $0x270] sm:$0xff]
    %v503 = vld [vmem:[#allocation7 + $0x278] sm:$0xff]
    %v504 = vld [vmem:[#allocation7 + $0x280] sm:$0xff]
    %v505 = vld [vmem:[#allocation7 + $0x288] sm:$0xff]
    %v506 = vld [vmem:[#allocation7 + $0x290] sm:$0xff]
    %v507 = vld [vmem:[#allocation7 + $0x298] sm:$0xff]
    %v508 = vld [vmem:[#allocation7 + $0x2a0] sm:$0xff]
    %v509 = vld [vmem:[#allocation7 + $0x2a8] sm:$0xff]
    %v510 = vld [vmem:[#allocation7 + $0x2b0] sm:$0xff]
    %v511 = vld [vmem:[#allocation7 + $0x2b8] sm:$0xff]
    %v512 = vld [vmem:[#allocation7 + $0x2c0] sm:$0xff]
    %v513 = vld [vmem:[#allocation7 + $0x2c8] sm:$0xff]
    %v514 = vld [vmem:[#allocation7 + $0x2d0] sm:$0xff]
    %v515 = vld [vmem:[#allocation7 + $0x2d8] sm:$0xff]
    %v516 = vld [vmem:[#allocation7 + $0x2e0] sm:$0xff]
    %v517 = vld [vmem:[#allocation7 + $0x2e8] sm:$0xff]
    %v518 = vld [vmem:[#allocation7 + $0x2f0] sm:$0xff]
    %v519 = vld [vmem:[#allocation7 + $0x2f8] sm:$0xff]
    %v520 = vld [vmem:[#allocation7 + $0x300] sm:$0xff]
    %v521 = vld [vmem:[#allocation7 + $0x308] sm:$0xff]
    %v522 = vld [vmem:[#allocation7 + $0x310] sm:$0xff]
    %v523 = vld [vmem:[#allocation7 + $0x318] sm:$0xff]
    %v524 = vld [vmem:[#allocation7 + $0x320] sm:$0xff]
    %v525 = vld [vmem:[#allocation7 + $0x328] sm:$0xff]
    %v526 = vld [vmem:[#allocation7 + $0x330] sm:$0xff]
    %v527 = vld [vmem:[#allocation7 + $0x338] sm:$0xff]
    %v528 = vld [vmem:[#allocation7 + $0x340] sm:$0xff]
    %v529 = vld [vmem:[#allocation7 + $0x348] sm:$0xff]
    %v530 = vld [vmem:[#allocation7 + $0x350] sm:$0xff]
    %v531 = vld [vmem:[#allocation7 + $0x358] sm:$0xff]
    %v532 = vld [vmem:[#allocation7 + $0x360] sm:$0xff]
    %v533 = vld [vmem:[#allocation7 + $0x368] sm:$0xff]
    %v534 = vld [vmem:[#allocation7 + $0x370] sm:$0xff]
    %v535 = vld [vmem:[#allocation7 + $0x378] sm:$0xff]
    %v536 = vld [vmem:[#allocation7 + $0x380] sm:$0xff]
    %v537 = vld [vmem:[#allocation7 + $0x388] sm:$0xff]
    %v538 = vld [vmem:[#allocation7 + $0x390] sm:$0xff]
    %v539 = vld [vmem:[#allocation7 + $0x398] sm:$0xff]
    %v540 = vld [vmem:[#allocation7 + $0x3a0] sm:$0xff]
    %v541 = vld [vmem:[#allocation7 + $0x3a8] sm:$0xff]
    %v542 = vld [vmem:[#allocation7 + $0x3b0] sm:$0xff]
    %v543 = vld [vmem:[#allocation7 + $0x3b8] sm:$0xff]
    %v544 = vld [vmem:[#allocation7 + $0x3c0] sm:$0xff]
    %v545 = vld [vmem:[#allocation7 + $0x3c8] sm:$0xff]
    %v546 = vld [vmem:[#allocation7 + $0x3d0] sm:$0xff]
    %v547 = vld [vmem:[#allocation7 + $0x3d8] sm:$0xff]
    %v548 = vld [vmem:[#allocation7 + $0x3e0] sm:$0xff]
    %v549 = vld [vmem:[#allocation7 + $0x3e8] sm:$0xff]
    %v550 = vld [vmem:[#allocation7 + $0x3f0] sm:$0xff]
    %v551 = vld [vmem:[#allocation7 + $0x3f8] sm:$0xff]
    %v552 = vld [vmem:[#allocation7 + $0x400] sm:$0xff]
    %v553 = vld [vmem:[#allocation7 + $0x408] sm:$0xff]
    %v554 = vld [vmem:[#allocation7 + $0x410] sm:$0xff]
    %v555 = vld [vmem:[#allocation7 + $0x418] sm:$0xff]
    %v556 = vld [vmem:[#allocation7 + $0x420] sm:$0xff]
    %v557 = vld [vmem:[#allocation7 + $0x428] sm:$0xff]
    %v558 = vld [vmem:[#allocation7 + $0x430] sm:$0xff]
    %v559 = vld [vmem:[#allocation7 + $0x438] sm:$0xff]
    %v560 = vld [vmem:[#allocation7 + $0x440] sm:$0xff]
    %v561 = vld [vmem:[#allocation7 + $0x448] sm:$0xff]
    %v562 = vld [vmem:[#allocation7 + $0x450] sm:$0xff]
    %v563 = vld [vmem:[#allocation7 + $0x458] sm:$0xff]
    %v564 = vld [vmem:[#allocation7 + $0x460] sm:$0xff]
    %v565 = vld [vmem:[#allocation7 + $0x468] sm:$0xff]
    %v566 = vld [vmem:[#allocation7 + $0x470] sm:$0xff]
    %v567 = vld [vmem:[#allocation7 + $0x478] sm:$0xff]
    %v568 = vld [vmem:[#allocation7 + $0x480] sm:$0xff]
    %v569 = vld [vmem:[#allocation7 + $0x488] sm:$0xff]
    %v570 = vld [vmem:[#allocation7 + $0x490] sm:$0xff]
    %v571 = vld [vmem:[#allocation7 + $0x498] sm:$0xff]
    %v572 = vld [vmem:[#allocation7 + $0x4a0] sm:$0xff]
    %v573 = vld [vmem:[#allocation7 + $0x4a8] sm:$0xff]
    %v574 = vld [vmem:[#allocation7 + $0x4b0] sm:$0xff]
    %v575 = vld [vmem:[#allocation7 + $0x4b8] sm:$0xff]
    %v576 = vld [vmem:[#allocation7 + $0x4c0] sm:$0xff]
    %v577 = vld [vmem:[#allocation7 + $0x4c8] sm:$0xff]
    %v578 = vld [vmem:[#allocation7 + $0x4d0] sm:$0xff]
    %v579 = vld [vmem:[#allocation7 + $0x4d8] sm:$0xff]
    %v580 = vld [vmem:[#allocation7 + $0x4e0] sm:$0xff]
    %v581 = vld [vmem:[#allocation7 + $0x4e8] sm:$0xff]
    %v582 = vld [vmem:[#allocation7 + $0x4f0] sm:$0xff]
    %v583 = vld [vmem:[#allocation7 + $0x4f8] sm:$0xff]
    %v584 = vld [vmem:[#allocation7 + $0x500] sm:$0xff]
    %v585 = vld [vmem:[#allocation7 + $0x508] sm:$0xff]
    %v586 = vld [vmem:[#allocation7 + $0x510] sm:$0xff]
    %v587 = vld [vmem:[#allocation7 + $0x518] sm:$0xff]
    %v588 = vld [vmem:[#allocation7 + $0x520] sm:$0xff]
    %v589 = vld [vmem:[#allocation7 + $0x528] sm:$0xff]
    %v590 = vld [vmem:[#allocation7 + $0x530] sm:$0xff]
    %v591 = vld [vmem:[#allocation7 + $0x538] sm:$0xff]
    %v592 = vld [vmem:[#allocation7 + $0x540] sm:$0xff]
    %v593 = vld [vmem:[#allocation7 + $0x548] sm:$0xff]
    %v594 = vld [vmem:[#allocation7 + $0x550] sm:$0xff]
    %v595 = vld [vmem:[#allocation7 + $0x558] sm:$0xff]
    %v596 = vld [vmem:[#allocation7 + $0x560] sm:$0xff]
    %v597 = vld [vmem:[#allocation7 + $0x568] sm:$0xff]
    %v598 = vld [vmem:[#allocation7 + $0x570] sm:$0xff]
    %v599 = vld [vmem:[#allocation7 + $0x578] sm:$0xff]
    %v600 = vld [vmem:[#allocation7 + $0x580] sm:$0xff]
    %v601 = vld [vmem:[#allocation7 + $0x588] sm:$0xff]
    %v602 = vld [vmem:[#allocation7 + $0x590] sm:$0xff]
    %v603 = vld [vmem:[#allocation7 + $0x598] sm:$0xff]
    %v604 = vld [vmem:[#allocation7 + $0x5a0] sm:$0xff]
    %v605 = vld [vmem:[#allocation7 + $0x5a8] sm:$0xff]
    %v606 = vld [vmem:[#allocation7 + $0x5b0] sm:$0xff]
    %v607 = vld [vmem:[#allocation7 + $0x5b8] sm:$0xff]
    %v608 = vld [vmem:[#allocation7 + $0x5c0] sm:$0xff]
    %v609 = vld [vmem:[#allocation7 + $0x5c8] sm:$0xff]
    %v610 = vld [vmem:[#allocation7 + $0x5d0] sm:$0xff]
    %v611 = vld [vmem:[#allocation7 + $0x5d8] sm:$0xff]
    %v612 = vld [vmem:[#allocation7 + $0x5e0] sm:$0xff]
    %v613 = vld [vmem:[#allocation7 + $0x5e8] sm:$0xff]
    %v614 = vld [vmem:[#allocation7 + $0x5f0] sm:$0xff]
    %v615 = vld [vmem:[#allocation7 + $0x5f8] sm:$0xff]
    %v616 = vld [vmem:[#allocation7 + $0x600] sm:$0xff]
    %v617 = vld [vmem:[#allocation7 + $0x608] sm:$0xff]
    %v618 = vld [vmem:[#allocation7 + $0x610] sm:$0xff]
    %v619 = vld [vmem:[#allocation7 + $0x618] sm:$0xff]
    %v620 = vld [vmem:[#allocation7 + $0x620] sm:$0xff]
    %v621 = vld [vmem:[#allocation7 + $0x628] sm:$0xff]
    %v622 = vld [vmem:[#allocation7 + $0x630] sm:$0xff]
    %v623 = vld [vmem:[#allocation7 + $0x638] sm:$0xff]
    %v624 = vld [vmem:[#allocation7 + $0x640] sm:$0xff]
    %v625 = vld [vmem:[#allocation7 + $0x648] sm:$0xff]
    %v626 = vld [vmem:[#allocation7 + $0x650] sm:$0xff]
    %v627 = vld [vmem:[#allocation7 + $0x658] sm:$0xff]
    %v628 = vld [vmem:[#allocation7 + $0x660] sm:$0xff]
    %v629 = vld [vmem:[#allocation7 + $0x668] sm:$0xff]
    %v630 = vld [vmem:[#allocation7 + $0x670] sm:$0xff]
    %v631 = vld [vmem:[#allocation7 + $0x678] sm:$0xff]
    %v632 = vld [vmem:[#allocation7 + $0x680] sm:$0xff]
    %v633 = vld [vmem:[#allocation7 + $0x688] sm:$0xff]
    %v634 = vld [vmem:[#allocation7 + $0x690] sm:$0xff]
    %v635 = vld [vmem:[#allocation7 + $0x698] sm:$0xff]
    %v636 = vld [vmem:[#allocation7 + $0x6a0] sm:$0xff]
    %v637 = vld [vmem:[#allocation7 + $0x6a8] sm:$0xff]
    %v638 = vld [vmem:[#allocation7 + $0x6b0] sm:$0xff]
    %v639 = vld [vmem:[#allocation7 + $0x6b8] sm:$0xff]
    %v640 = vld [vmem:[#allocation7 + $0x6c0] sm:$0xff]
    %v641 = vld [vmem:[#allocation7 + $0x6c8] sm:$0xff]
    %v642 = vld [vmem:[#allocation7 + $0x6d0] sm:$0xff]
    %v643 = vld [vmem:[#allocation7 + $0x6d8] sm:$0xff]
    %v644 = vld [vmem:[#allocation7 + $0x6e0] sm:$0xff]
    %v645 = vld [vmem:[#allocation7 + $0x6e8] sm:$0xff]
    %v646 = vld [vmem:[#allocation7 + $0x6f0] sm:$0xff]
    %v647 = vld [vmem:[#allocation7 + $0x6f8] sm:$0xff]
    %v648 = vld [vmem:[#allocation7 + $0x700] sm:$0xff]
    %v649 = vld [vmem:[#allocation7 + $0x708] sm:$0xff]
    %v650 = vld [vmem:[#allocation7 + $0x710] sm:$0xff]
    %v651 = vld [vmem:[#allocation7 + $0x718] sm:$0xff]
    %v652 = vld [vmem:[#allocation7 + $0x720] sm:$0xff]
    %v653 = vld [vmem:[#allocation7 + $0x728] sm:$0xff]
    %v654 = vld [vmem:[#allocation7 + $0x730] sm:$0xff]
    %v655 = vld [vmem:[#allocation7 + $0x738] sm:$0xff]
    %v656 = vld [vmem:[#allocation7 + $0x740] sm:$0xff]
    %v657 = vld [vmem:[#allocation7 + $0x748] sm:$0xff]
    %v658 = vld [vmem:[#allocation7 + $0x750] sm:$0xff]
    %v659 = vld [vmem:[#allocation7 + $0x758] sm:$0xff]
    %v660 = vld [vmem:[#allocation7 + $0x760] sm:$0xff]
    %v661 = vld [vmem:[#allocation7 + $0x768] sm:$0xff]
    %v662 = vld [vmem:[#allocation7 + $0x770] sm:$0xff]
    %v663 = vld [vmem:[#allocation7 + $0x778] sm:$0xff]
    %v664 = vld [vmem:[#allocation7 + $0x780] sm:$0xff]
    %v665 = vld [vmem:[#allocation7 + $0x788] sm:$0xff]
    %v666 = vld [vmem:[#allocation7 + $0x790] sm:$0xff]
    %v667 = vld [vmem:[#allocation7 + $0x798] sm:$0xff]
    %v668 = vld [vmem:[#allocation7 + $0x7a0] sm:$0xff]
    %v669 = vld [vmem:[#allocation7 + $0x7a8] sm:$0xff]
    %v670 = vld [vmem:[#allocation7 + $0x7b0] sm:$0xff]
    %v671 = vld [vmem:[#allocation7 + $0x7b8] sm:$0xff]
    %v672 = vld [vmem:[#allocation7 + $0x7c0] sm:$0xff]
    %v673 = vld [vmem:[#allocation7 + $0x7c8] sm:$0xff]
    %v674 = vld [vmem:[#allocation7 + $0x7d0] sm:$0xff]
    %v675 = vld [vmem:[#allocation7 + $0x7d8] sm:$0xff]
    %v676 = vld [vmem:[#allocation7 + $0x7e0] sm:$0xff]
    %v677 = vld [vmem:[#allocation7 + $0x7e8] sm:$0xff]
    %v678 = vld [vmem:[#allocation7 + $0x7f0] sm:$0xff]
    %v679 = vld [vmem:[#allocation7 + $0x7f8] sm:$0xff]
    %v680 = vld [vmem:[%s1] sm:$0x3]
    %v682 = vperm.slane %v680, 0
    %v683 = vperm.slane %v680, 1
    %v702 = vunpack.c.l.b16 %v408
    %v703 = vunpack.c.h.b16 %v408
    %v704 = vunpack.c.l.b16 %v409
    %v705 = vunpack.c.h.b16 %v409
    %v706 = vunpack.c.l.b16 %v410
    %v707 = vunpack.c.h.b16 %v410
    %v708 = vunpack.c.l.b16 %v411
    %v709 = vunpack.c.h.b16 %v411
    %v710 = vunpack.c.l.b16 %v412
    %v711 = vunpack.c.h.b16 %v412
    %v712 = vunpack.c.l.b16 %v413
    %v713 = vunpack.c.h.b16 %v413
    %v714 = vunpack.c.l.b16 %v414
    %v715 = vunpack.c.h.b16 %v414
    %v716 = vunpack.c.l.b16 %v415
    %v717 = vunpack.c.h.b16 %v415
    %v718 = vunpack.c.l.b16 %v416
    %v719 = vunpack.c.h.b16 %v416
    %v720 = vunpack.c.l.b16 %v417
    %v721 = vunpack.c.h.b16 %v417
    %v722 = vunpack.c.l.b16 %v418
    %v723 = vunpack.c.h.b16 %v418
    %v724 = vunpack.c.l.b16 %v419
    %v725 = vunpack.c.h.b16 %v419
    %v726 = vunpack.c.l.b16 %v420
    %v727 = vunpack.c.h.b16 %v420
    %v728 = vunpack.c.l.b16 %v421
    %v729 = vunpack.c.h.b16 %v421
    %v730 = vunpack.c.l.b16 %v422
    %v731 = vunpack.c.h.b16 %v422
    %v732 = vunpack.c.l.b16 %v423
    %v733 = vunpack.c.h.b16 %v423
    %v734 = vpack.c.b16 %v718, %v702
    %v735 = vpack.c.b16 %v719, %v703
    %v736 = vpack.c.b16 %v720, %v704
    %v737 = vpack.c.b16 %v721, %v705
    %v738 = vpack.c.b16 %v722, %v706
    %v739 = vpack.c.b16 %v723, %v707
    %v740 = vpack.c.b16 %v724, %v708
    %v741 = vpack.c.b16 %v725, %v709
    %v742 = vpack.c.b16 %v726, %v710
    %v743 = vpack.c.b16 %v727, %v711
    %v744 = vpack.c.b16 %v728, %v712
    %v745 = vpack.c.b16 %v729, %v713
    %v746 = vpack.c.b16 %v730, %v714
    %v747 = vpack.c.b16 %v731, %v715
    %v748 = vpack.c.b16 %v732, %v716
    %v749 = vpack.c.b16 %v733, %v717
    %v1022 = vunpack.c.l.b16 %v424
    %v1023 = vunpack.c.h.b16 %v424
    %v1024 = vunpack.c.l.b16 %v425
    %v1025 = vunpack.c.h.b16 %v425
    %v1026 = vunpack.c.l.b16 %v426
    %v1027 = vunpack.c.h.b16 %v426
    %v1028 = vunpack.c.l.b16 %v427
    %v1029 = vunpack.c.h.b16 %v427
    %v1030 = vunpack.c.l.b16 %v428
    %v1031 = vunpack.c.h.b16 %v428
    %v1032 = vunpack.c.l.b16 %v429
    %v1033 = vunpack.c.h.b16 %v429
    %v1034 = vunpack.c.l.b16 %v430
    %v1035 = vunpack.c.h.b16 %v430
    %v1036 = vunpack.c.l.b16 %v431
    %v1037 = vunpack.c.h.b16 %v431
    %v1038 = vunpack.c.l.b16 %v432
    %v1039 = vunpack.c.h.b16 %v432
    %v1040 = vunpack.c.l.b16 %v433
    %v1041 = vunpack.c.h.b16 %v433
    %v1042 = vunpack.c.l.b16 %v434
    %v1043 = vunpack.c.h.b16 %v434
    %v1044 = vunpack.c.l.b16 %v435
    %v1045 = vunpack.c.h.b16 %v435
    %v1046 = vunpack.c.l.b16 %v436
    %v1047 = vunpack.c.h.b16 %v436
    %v1048 = vunpack.c.l.b16 %v437
    %v1049 = vunpack.c.h.b16 %v437
    %v1050 = vunpack.c.l.b16 %v438
    %v1051 = vunpack.c.h.b16 %v438
    %v1052 = vunpack.c.l.b16 %v439
    %v1053 = vunpack.c.h.b16 %v439
    %v1054 = vunpack.c.l.b16 %v440
    %v1055 = vunpack.c.h.b16 %v440
    %v1056 = vunpack.c.l.b16 %v441
    %v1057 = vunpack.c.h.b16 %v441
    %v1058 = vunpack.c.l.b16 %v442
    %v1059 = vunpack.c.h.b16 %v442
    %v1060 = vunpack.c.l.b16 %v443
    %v1061 = vunpack.c.h.b16 %v443
    %v1062 = vunpack.c.l.b16 %v444
    %v1063 = vunpack.c.h.b16 %v444
    %v1064 = vunpack.c.l.b16 %v445
    %v1065 = vunpack.c.h.b16 %v445
    %v1066 = vunpack.c.l.b16 %v446
    %v1067 = vunpack.c.h.b16 %v446
    %v1068 = vunpack.c.l.b16 %v447
    %v1069 = vunpack.c.h.b16 %v447
    %v1070 = vunpack.c.l.b16 %v448
    %v1071 = vunpack.c.h.b16 %v448
    %v1072 = vunpack.c.l.b16 %v449
    %v1073 = vunpack.c.h.b16 %v449
    %v1074 = vunpack.c.l.b16 %v450
    %v1075 = vunpack.c.h.b16 %v450
    %v1076 = vunpack.c.l.b16 %v451
    %v1077 = vunpack.c.h.b16 %v451
    %v1078 = vunpack.c.l.b16 %v452
    %v1079 = vunpack.c.h.b16 %v452
    %v1080 = vunpack.c.l.b16 %v453
    %v1081 = vunpack.c.h.b16 %v453
    %v1082 = vunpack.c.l.b16 %v454
    %v1083 = vunpack.c.h.b16 %v454
    %v1084 = vunpack.c.l.b16 %v455
    %v1085 = vunpack.c.h.b16 %v455
    %v1086 = vunpack.c.l.b16 %v456
    %v1087 = vunpack.c.h.b16 %v456
    %v1088 = vunpack.c.l.b16 %v457
    %v1089 = vunpack.c.h.b16 %v457
    %v1090 = vunpack.c.l.b16 %v458
    %v1091 = vunpack.c.h.b16 %v458
    %v1092 = vunpack.c.l.b16 %v459
    %v1093 = vunpack.c.h.b16 %v459
    %v1094 = vunpack.c.l.b16 %v460
    %v1095 = vunpack.c.h.b16 %v460
    %v1096 = vunpack.c.l.b16 %v461
    %v1097 = vunpack.c.h.b16 %v461
    %v1098 = vunpack.c.l.b16 %v462
    %v1099 = vunpack.c.h.b16 %v462
    %v1100 = vunpack.c.l.b16 %v463
    %v1101 = vunpack.c.h.b16 %v463
    %v1102 = vunpack.c.l.b16 %v464
    %v1103 = vunpack.c.h.b16 %v464
    %v1104 = vunpack.c.l.b16 %v465
    %v1105 = vunpack.c.h.b16 %v465
    %v1106 = vunpack.c.l.b16 %v466
    %v1107 = vunpack.c.h.b16 %v466
    %v1108 = vunpack.c.l.b16 %v467
    %v1109 = vunpack.c.h.b16 %v467
    %v1110 = vunpack.c.l.b16 %v468
    %v1111 = vunpack.c.h.b16 %v468
    %v1112 = vunpack.c.l.b16 %v469
    %v1113 = vunpack.c.h.b16 %v469
    %v1114 = vunpack.c.l.b16 %v470
    %v1115 = vunpack.c.h.b16 %v470
    %v1116 = vunpack.c.l.b16 %v471
    %v1117 = vunpack.c.h.b16 %v471
    %v1118 = vunpack.c.l.b16 %v472
    %v1119 = vunpack.c.h.b16 %v472
    %v1120 = vunpack.c.l.b16 %v473
    %v1121 = vunpack.c.h.b16 %v473
    %v1122 = vunpack.c.l.b16 %v474
    %v1123 = vunpack.c.h.b16 %v474
    %v1124 = vunpack.c.l.b16 %v475
    %v1125 = vunpack.c.h.b16 %v475
    %v1126 = vunpack.c.l.b16 %v476
    %v1127 = vunpack.c.h.b16 %v476
    %v1128 = vunpack.c.l.b16 %v477
    %v1129 = vunpack.c.h.b16 %v477
    %v1130 = vunpack.c.l.b16 %v478
    %v1131 = vunpack.c.h.b16 %v478
    %v1132 = vunpack.c.l.b16 %v479
    %v1133 = vunpack.c.h.b16 %v479
    %v1134 = vunpack.c.l.b16 %v480
    %v1135 = vunpack.c.h.b16 %v480
    %v1136 = vunpack.c.l.b16 %v481
    %v1137 = vunpack.c.h.b16 %v481
    %v1138 = vunpack.c.l.b16 %v482
    %v1139 = vunpack.c.h.b16 %v482
    %v1140 = vunpack.c.l.b16 %v483
    %v1141 = vunpack.c.h.b16 %v483
    %v1142 = vunpack.c.l.b16 %v484
    %v1143 = vunpack.c.h.b16 %v484
    %v1144 = vunpack.c.l.b16 %v485
    %v1145 = vunpack.c.h.b16 %v485
    %v1146 = vunpack.c.l.b16 %v486
    %v1147 = vunpack.c.h.b16 %v486
    %v1148 = vunpack.c.l.b16 %v487
    %v1149 = vunpack.c.h.b16 %v487
    %v1150 = vunpack.c.l.b16 %v488
    %v1151 = vunpack.c.h.b16 %v488
    %v1152 = vunpack.c.l.b16 %v489
    %v1153 = vunpack.c.h.b16 %v489
    %v1154 = vunpack.c.l.b16 %v490
    %v1155 = vunpack.c.h.b16 %v490
    %v1156 = vunpack.c.l.b16 %v491
    %v1157 = vunpack.c.h.b16 %v491
    %v1158 = vunpack.c.l.b16 %v492
    %v1159 = vunpack.c.h.b16 %v492
    %v1160 = vunpack.c.l.b16 %v493
    %v1161 = vunpack.c.h.b16 %v493
    %v1162 = vunpack.c.l.b16 %v494
    %v1163 = vunpack.c.h.b16 %v494
    %v1164 = vunpack.c.l.b16 %v495
    %v1165 = vunpack.c.h.b16 %v495
    %v1166 = vunpack.c.l.b16 %v496
    %v1167 = vunpack.c.h.b16 %v496
    %v1168 = vunpack.c.l.b16 %v497
    %v1169 = vunpack.c.h.b16 %v497
    %v1170 = vunpack.c.l.b16 %v498
    %v1171 = vunpack.c.h.b16 %v498
    %v1172 = vunpack.c.l.b16 %v499
    %v1173 = vunpack.c.h.b16 %v499
    %v1174 = vunpack.c.l.b16 %v500
    %v1175 = vunpack.c.h.b16 %v500
    %v1176 = vunpack.c.l.b16 %v501
    %v1177 = vunpack.c.h.b16 %v501
    %v1178 = vunpack.c.l.b16 %v502
    %v1179 = vunpack.c.h.b16 %v502
    %v1180 = vunpack.c.l.b16 %v503
    %v1181 = vunpack.c.h.b16 %v503
    %v1182 = vunpack.c.l.b16 %v504
    %v1183 = vunpack.c.h.b16 %v504
    %v1184 = vunpack.c.l.b16 %v505
    %v1185 = vunpack.c.h.b16 %v505
    %v1186 = vunpack.c.l.b16 %v506
    %v1187 = vunpack.c.h.b16 %v506
    %v1188 = vunpack.c.l.b16 %v507
    %v1189 = vunpack.c.h.b16 %v507
    %v1190 = vunpack.c.l.b16 %v508
    %v1191 = vunpack.c.h.b16 %v508
    %v1192 = vunpack.c.l.b16 %v509
    %v1193 = vunpack.c.h.b16 %v509
    %v1194 = vunpack.c.l.b16 %v510
    %v1195 = vunpack.c.h.b16 %v510
    %v1196 = vunpack.c.l.b16 %v511
    %v1197 = vunpack.c.h.b16 %v511
    %v1198 = vunpack.c.l.b16 %v512
    %v1199 = vunpack.c.h.b16 %v512
    %v1200 = vunpack.c.l.b16 %v513
    %v1201 = vunpack.c.h.b16 %v513
    %v1202 = vunpack.c.l.b16 %v514
    %v1203 = vunpack.c.h.b16 %v514
    %v1204 = vunpack.c.l.b16 %v515
    %v1205 = vunpack.c.h.b16 %v515
    %v1206 = vunpack.c.l.b16 %v516
    %v1207 = vunpack.c.h.b16 %v516
    %v1208 = vunpack.c.l.b16 %v517
    %v1209 = vunpack.c.h.b16 %v517
    %v1210 = vunpack.c.l.b16 %v518
    %v1211 = vunpack.c.h.b16 %v518
    %v1212 = vunpack.c.l.b16 %v519
    %v1213 = vunpack.c.h.b16 %v519
    %v1214 = vunpack.c.l.b16 %v520
    %v1215 = vunpack.c.h.b16 %v520
    %v1216 = vunpack.c.l.b16 %v521
    %v1217 = vunpack.c.h.b16 %v521
    %v1218 = vunpack.c.l.b16 %v522
    %v1219 = vunpack.c.h.b16 %v522
    %v1220 = vunpack.c.l.b16 %v523
    %v1221 = vunpack.c.h.b16 %v523
    %v1222 = vunpack.c.l.b16 %v524
    %v1223 = vunpack.c.h.b16 %v524
    %v1224 = vunpack.c.l.b16 %v525
    %v1225 = vunpack.c.h.b16 %v525
    %v1226 = vunpack.c.l.b16 %v526
    %v1227 = vunpack.c.h.b16 %v526
    %v1228 = vunpack.c.l.b16 %v527
    %v1229 = vunpack.c.h.b16 %v527
    %v1230 = vunpack.c.l.b16 %v528
    %v1231 = vunpack.c.h.b16 %v528
    %v1232 = vunpack.c.l.b16 %v529
    %v1233 = vunpack.c.h.b16 %v529
    %v1234 = vunpack.c.l.b16 %v530
    %v1235 = vunpack.c.h.b16 %v530
    %v1236 = vunpack.c.l.b16 %v531
    %v1237 = vunpack.c.h.b16 %v531
    %v1238 = vunpack.c.l.b16 %v532
    %v1239 = vunpack.c.h.b16 %v532
    %v1240 = vunpack.c.l.b16 %v533
    %v1241 = vunpack.c.h.b16 %v533
    %v1242 = vunpack.c.l.b16 %v534
    %v1243 = vunpack.c.h.b16 %v534
    %v1244 = vunpack.c.l.b16 %v535
    %v1245 = vunpack.c.h.b16 %v535
    %v1246 = vunpack.c.l.b16 %v536
    %v1247 = vunpack.c.h.b16 %v536
    %v1248 = vunpack.c.l.b16 %v537
    %v1249 = vunpack.c.h.b16 %v537
    %v1250 = vunpack.c.l.b16 %v538
    %v1251 = vunpack.c.h.b16 %v538
    %v1252 = vunpack.c.l.b16 %v539
    %v1253 = vunpack.c.h.b16 %v539
    %v1254 = vunpack.c.l.b16 %v540
    %v1255 = vunpack.c.h.b16 %v540
    %v1256 = vunpack.c.l.b16 %v541
    %v1257 = vunpack.c.h.b16 %v541
    %v1258 = vunpack.c.l.b16 %v542
    %v1259 = vunpack.c.h.b16 %v542
    %v1260 = vunpack.c.l.b16 %v543
    %v1261 = vunpack.c.h.b16 %v543
    %v1262 = vunpack.c.l.b16 %v544
    %v1263 = vunpack.c.h.b16 %v544
    %v1264 = vunpack.c.l.b16 %v545
    %v1265 = vunpack.c.h.b16 %v545
    %v1266 = vunpack.c.l.b16 %v546
    %v1267 = vunpack.c.h.b16 %v546
    %v1268 = vunpack.c.l.b16 %v547
    %v1269 = vunpack.c.h.b16 %v547
    %v1270 = vunpack.c.l.b16 %v548
    %v1271 = vunpack.c.h.b16 %v548
    %v1272 = vunpack.c.l.b16 %v549
    %v1273 = vunpack.c.h.b16 %v549
    %v1274 = vunpack.c.l.b16 %v550
    %v1275 = vunpack.c.h.b16 %v550
    %v1276 = vunpack.c.l.b16 %v551
    %v1277 = vunpack.c.h.b16 %v551
    %v1278 = vunpack.c.l.b16 %v552
    %v1279 = vunpack.c.h.b16 %v552
    %v1280 = vunpack.c.l.b16 %v553
    %v1281 = vunpack.c.h.b16 %v553
    %v1282 = vunpack.c.l.b16 %v554
    %v1283 = vunpack.c.h.b16 %v554
    %v1284 = vunpack.c.l.b16 %v555
    %v1285 = vunpack.c.h.b16 %v555
    %v1286 = vunpack.c.l.b16 %v556
    %v1287 = vunpack.c.h.b16 %v556
    %v1288 = vunpack.c.l.b16 %v557
    %v1289 = vunpack.c.h.b16 %v557
    %v1290 = vunpack.c.l.b16 %v558
    %v1291 = vunpack.c.h.b16 %v558
    %v1292 = vunpack.c.l.b16 %v559
    %v1293 = vunpack.c.h.b16 %v559
    %v1294 = vunpack.c.l.b16 %v560
    %v1295 = vunpack.c.h.b16 %v560
    %v1296 = vunpack.c.l.b16 %v561
    %v1297 = vunpack.c.h.b16 %v561
    %v1298 = vunpack.c.l.b16 %v562
    %v1299 = vunpack.c.h.b16 %v562
    %v1300 = vunpack.c.l.b16 %v563
    %v1301 = vunpack.c.h.b16 %v563
    %v1302 = vunpack.c.l.b16 %v564
    %v1303 = vunpack.c.h.b16 %v564
    %v1304 = vunpack.c.l.b16 %v565
    %v1305 = vunpack.c.h.b16 %v565
    %v1306 = vunpack.c.l.b16 %v566
    %v1307 = vunpack.c.h.b16 %v566
    %v1308 = vunpack.c.l.b16 %v567
    %v1309 = vunpack.c.h.b16 %v567
    %v1310 = vunpack.c.l.b16 %v568
    %v1311 = vunpack.c.h.b16 %v568
    %v1312 = vunpack.c.l.b16 %v569
    %v1313 = vunpack.c.h.b16 %v569
    %v1314 = vunpack.c.l.b16 %v570
    %v1315 = vunpack.c.h.b16 %v570
    %v1316 = vunpack.c.l.b16 %v571
    %v1317 = vunpack.c.h.b16 %v571
    %v1318 = vunpack.c.l.b16 %v572
    %v1319 = vunpack.c.h.b16 %v572
    %v1320 = vunpack.c.l.b16 %v573
    %v1321 = vunpack.c.h.b16 %v573
    %v1322 = vunpack.c.l.b16 %v574
    %v1323 = vunpack.c.h.b16 %v574
    %v1324 = vunpack.c.l.b16 %v575
    %v1325 = vunpack.c.h.b16 %v575
    %v1326 = vunpack.c.l.b16 %v576
    %v1327 = vunpack.c.h.b16 %v576
    %v1328 = vunpack.c.l.b16 %v577
    %v1329 = vunpack.c.h.b16 %v577
    %v1330 = vunpack.c.l.b16 %v578
    %v1331 = vunpack.c.h.b16 %v578
    %v1332 = vunpack.c.l.b16 %v579
    %v1333 = vunpack.c.h.b16 %v579
    %v1334 = vunpack.c.l.b16 %v580
    %v1335 = vunpack.c.h.b16 %v580
    %v1336 = vunpack.c.l.b16 %v581
    %v1337 = vunpack.c.h.b16 %v581
    %v1338 = vunpack.c.l.b16 %v582
    %v1339 = vunpack.c.h.b16 %v582
    %v1340 = vunpack.c.l.b16 %v583
    %v1341 = vunpack.c.h.b16 %v583
    %v1342 = vunpack.c.l.b16 %v584
    %v1343 = vunpack.c.h.b16 %v584
    %v1344 = vunpack.c.l.b16 %v585
    %v1345 = vunpack.c.h.b16 %v585
    %v1346 = vunpack.c.l.b16 %v586
    %v1347 = vunpack.c.h.b16 %v586
    %v1348 = vunpack.c.l.b16 %v587
    %v1349 = vunpack.c.h.b16 %v587
    %v1350 = vunpack.c.l.b16 %v588
    %v1351 = vunpack.c.h.b16 %v588
    %v1352 = vunpack.c.l.b16 %v589
    %v1353 = vunpack.c.h.b16 %v589
    %v1354 = vunpack.c.l.b16 %v590
    %v1355 = vunpack.c.h.b16 %v590
    %v1356 = vunpack.c.l.b16 %v591
    %v1357 = vunpack.c.h.b16 %v591
    %v1358 = vunpack.c.l.b16 %v592
    %v1359 = vunpack.c.h.b16 %v592
    %v1360 = vunpack.c.l.b16 %v593
    %v1361 = vunpack.c.h.b16 %v593
    %v1362 = vunpack.c.l.b16 %v594
    %v1363 = vunpack.c.h.b16 %v594
    %v1364 = vunpack.c.l.b16 %v595
    %v1365 = vunpack.c.h.b16 %v595
    %v1366 = vunpack.c.l.b16 %v596
    %v1367 = vunpack.c.h.b16 %v596
    %v1368 = vunpack.c.l.b16 %v597
    %v1369 = vunpack.c.h.b16 %v597
    %v1370 = vunpack.c.l.b16 %v598
    %v1371 = vunpack.c.h.b16 %v598
    %v1372 = vunpack.c.l.b16 %v599
    %v1373 = vunpack.c.h.b16 %v599
    %v1374 = vunpack.c.l.b16 %v600
    %v1375 = vunpack.c.h.b16 %v600
    %v1376 = vunpack.c.l.b16 %v601
    %v1377 = vunpack.c.h.b16 %v601
    %v1378 = vunpack.c.l.b16 %v602
    %v1379 = vunpack.c.h.b16 %v602
    %v1380 = vunpack.c.l.b16 %v603
    %v1381 = vunpack.c.h.b16 %v603
    %v1382 = vunpack.c.l.b16 %v604
    %v1383 = vunpack.c.h.b16 %v604
    %v1384 = vunpack.c.l.b16 %v605
    %v1385 = vunpack.c.h.b16 %v605
    %v1386 = vunpack.c.l.b16 %v606
    %v1387 = vunpack.c.h.b16 %v606
    %v1388 = vunpack.c.l.b16 %v607
    %v1389 = vunpack.c.h.b16 %v607
    %v1390 = vunpack.c.l.b16 %v608
    %v1391 = vunpack.c.h.b16 %v608
    %v1392 = vunpack.c.l.b16 %v609
    %v1393 = vunpack.c.h.b16 %v609
    %v1394 = vunpack.c.l.b16 %v610
    %v1395 = vunpack.c.h.b16 %v610
    %v1396 = vunpack.c.l.b16 %v611
    %v1397 = vunpack.c.h.b16 %v611
    %v1398 = vunpack.c.l.b16 %v612
    %v1399 = vunpack.c.h.b16 %v612
    %v1400 = vunpack.c.l.b16 %v613
    %v1401 = vunpack.c.h.b16 %v613
    %v1402 = vunpack.c.l.b16 %v614
    %v1403 = vunpack.c.h.b16 %v614
    %v1404 = vunpack.c.l.b16 %v615
    %v1405 = vunpack.c.h.b16 %v615
    %v1406 = vunpack.c.l.b16 %v616
    %v1407 = vunpack.c.h.b16 %v616
    %v1408 = vunpack.c.l.b16 %v617
    %v1409 = vunpack.c.h.b16 %v617
    %v1410 = vunpack.c.l.b16 %v618
    %v1411 = vunpack.c.h.b16 %v618
    %v1412 = vunpack.c.l.b16 %v619
    %v1413 = vunpack.c.h.b16 %v619
    %v1414 = vunpack.c.l.b16 %v620
    %v1415 = vunpack.c.h.b16 %v620
    %v1416 = vunpack.c.l.b16 %v621
    %v1417 = vunpack.c.h.b16 %v621
    %v1418 = vunpack.c.l.b16 %v622
    %v1419 = vunpack.c.h.b16 %v622
    %v1420 = vunpack.c.l.b16 %v623
    %v1421 = vunpack.c.h.b16 %v623
    %v1422 = vunpack.c.l.b16 %v624
    %v1423 = vunpack.c.h.b16 %v624
    %v1424 = vunpack.c.l.b16 %v625
    %v1425 = vunpack.c.h.b16 %v625
    %v1426 = vunpack.c.l.b16 %v626
    %v1427 = vunpack.c.h.b16 %v626
    %v1428 = vunpack.c.l.b16 %v627
    %v1429 = vunpack.c.h.b16 %v627
    %v1430 = vunpack.c.l.b16 %v628
    %v1431 = vunpack.c.h.b16 %v628
    %v1432 = vunpack.c.l.b16 %v629
    %v1433 = vunpack.c.h.b16 %v629
    %v1434 = vunpack.c.l.b16 %v630
    %v1435 = vunpack.c.h.b16 %v630
    %v1436 = vunpack.c.l.b16 %v631
    %v1437 = vunpack.c.h.b16 %v631
    %v1438 = vunpack.c.l.b16 %v632
    %v1439 = vunpack.c.h.b16 %v632
    %v1440 = vunpack.c.l.b16 %v633
    %v1441 = vunpack.c.h.b16 %v633
    %v1442 = vunpack.c.l.b16 %v634
    %v1443 = vunpack.c.h.b16 %v634
    %v1444 = vunpack.c.l.b16 %v635
    %v1445 = vunpack.c.h.b16 %v635
    %v1446 = vunpack.c.l.b16 %v636
    %v1447 = vunpack.c.h.b16 %v636
    %v1448 = vunpack.c.l.b16 %v637
    %v1449 = vunpack.c.h.b16 %v637
    %v1450 = vunpack.c.l.b16 %v638
    %v1451 = vunpack.c.h.b16 %v638
    %v1452 = vunpack.c.l.b16 %v639
    %v1453 = vunpack.c.h.b16 %v639
    %v1454 = vunpack.c.l.b16 %v640
    %v1455 = vunpack.c.h.b16 %v640
    %v1456 = vunpack.c.l.b16 %v641
    %v1457 = vunpack.c.h.b16 %v641
    %v1458 = vunpack.c.l.b16 %v642
    %v1459 = vunpack.c.h.b16 %v642
    %v1460 = vunpack.c.l.b16 %v643
    %v1461 = vunpack.c.h.b16 %v643
    %v1462 = vunpack.c.l.b16 %v644
    %v1463 = vunpack.c.h.b16 %v644
    %v1464 = vunpack.c.l.b16 %v645
    %v1465 = vunpack.c.h.b16 %v645
    %v1466 = vunpack.c.l.b16 %v646
    %v1467 = vunpack.c.h.b16 %v646
    %v1468 = vunpack.c.l.b16 %v647
    %v1469 = vunpack.c.h.b16 %v647
    %v1470 = vunpack.c.l.b16 %v648
    %v1471 = vunpack.c.h.b16 %v648
    %v1472 = vunpack.c.l.b16 %v649
    %v1473 = vunpack.c.h.b16 %v649
    %v1474 = vunpack.c.l.b16 %v650
    %v1475 = vunpack.c.h.b16 %v650
    %v1476 = vunpack.c.l.b16 %v651
    %v1477 = vunpack.c.h.b16 %v651
    %v1478 = vunpack.c.l.b16 %v652
    %v1479 = vunpack.c.h.b16 %v652
    %v1480 = vunpack.c.l.b16 %v653
    %v1481 = vunpack.c.h.b16 %v653
    %v1482 = vunpack.c.l.b16 %v654
    %v1483 = vunpack.c.h.b16 %v654
    %v1484 = vunpack.c.l.b16 %v655
    %v1485 = vunpack.c.h.b16 %v655
    %v1486 = vunpack.c.l.b16 %v656
    %v1487 = vunpack.c.h.b16 %v656
    %v1488 = vunpack.c.l.b16 %v657
    %v1489 = vunpack.c.h.b16 %v657
    %v1490 = vunpack.c.l.b16 %v658
    %v1491 = vunpack.c.h.b16 %v658
    %v1492 = vunpack.c.l.b16 %v659
    %v1493 = vunpack.c.h.b16 %v659
    %v1494 = vunpack.c.l.b16 %v660
    %v1495 = vunpack.c.h.b16 %v660
    %v1496 = vunpack.c.l.b16 %v661
    %v1497 = vunpack.c.h.b16 %v661
    %v1498 = vunpack.c.l.b16 %v662
    %v1499 = vunpack.c.h.b16 %v662
    %v1500 = vunpack.c.l.b16 %v663
    %v1501 = vunpack.c.h.b16 %v663
    %v1502 = vunpack.c.l.b16 %v664
    %v1503 = vunpack.c.h.b16 %v664
    %v1504 = vunpack.c.l.b16 %v665
    %v1505 = vunpack.c.h.b16 %v665
    %v1506 = vunpack.c.l.b16 %v666
    %v1507 = vunpack.c.h.b16 %v666
    %v1508 = vunpack.c.l.b16 %v667
    %v1509 = vunpack.c.h.b16 %v667
    %v1510 = vunpack.c.l.b16 %v668
    %v1511 = vunpack.c.h.b16 %v668
    %v1512 = vunpack.c.l.b16 %v669
    %v1513 = vunpack.c.h.b16 %v669
    %v1514 = vunpack.c.l.b16 %v670
    %v1515 = vunpack.c.h.b16 %v670
    %v1516 = vunpack.c.l.b16 %v671
    %v1517 = vunpack.c.h.b16 %v671
    %v1518 = vunpack.c.l.b16 %v672
    %v1519 = vunpack.c.h.b16 %v672
    %v1520 = vunpack.c.l.b16 %v673
    %v1521 = vunpack.c.h.b16 %v673
    %v1522 = vunpack.c.l.b16 %v674
    %v1523 = vunpack.c.h.b16 %v674
    %v1524 = vunpack.c.l.b16 %v675
    %v1525 = vunpack.c.h.b16 %v675
    %v1526 = vunpack.c.l.b16 %v676
    %v1527 = vunpack.c.h.b16 %v676
    %v1528 = vunpack.c.l.b16 %v677
    %v1529 = vunpack.c.h.b16 %v677
    %v1530 = vunpack.c.l.b16 %v678
    %v1531 = vunpack.c.h.b16 %v678
    %v1532 = vunpack.c.l.b16 %v679
    %v1533 = vunpack.c.h.b16 %v679
    %v1534 = vpack.c.b16 %v1024, %v1022
    %v1535 = vpack.c.b16 %v1025, %v1023
    %v1536 = vpack.c.b16 %v1028, %v1026
    %v1537 = vpack.c.b16 %v1029, %v1027
    %v1538 = vpack.c.b16 %v1032, %v1030
    %v1539 = vpack.c.b16 %v1033, %v1031
    %v1540 = vpack.c.b16 %v1036, %v1034
    %v1541 = vpack.c.b16 %v1037, %v1035
    %v1542 = vpack.c.b16 %v1040, %v1038
    %v1543 = vpack.c.b16 %v1041, %v1039
    %v1544 = vpack.c.b16 %v1044, %v1042
    %v1545 = vpack.c.b16 %v1045, %v1043
    %v1546 = vpack.c.b16 %v1048, %v1046
    %v1547 = vpack.c.b16 %v1049, %v1047
    %v1548 = vpack.c.b16 %v1052, %v1050
    %v1549 = vpack.c.b16 %v1053, %v1051
    %v1550 = vpack.c.b16 %v1056, %v1054
    %v1551 = vpack.c.b16 %v1057, %v1055
    %v1552 = vpack.c.b16 %v1060, %v1058
    %v1553 = vpack.c.b16 %v1061, %v1059
    %v1554 = vpack.c.b16 %v1064, %v1062
    %v1555 = vpack.c.b16 %v1065, %v1063
    %v1556 = vpack.c.b16 %v1068, %v1066
    %v1557 = vpack.c.b16 %v1069, %v1067
    %v1558 = vpack.c.b16 %v1072, %v1070
    %v1559 = vpack.c.b16 %v1073, %v1071
    %v1560 = vpack.c.b16 %v1076, %v1074
    %v1561 = vpack.c.b16 %v1077, %v1075
    %v1562 = vpack.c.b16 %v1080, %v1078
    %v1563 = vpack.c.b16 %v1081, %v1079
    %v1564 = vpack.c.b16 %v1084, %v1082
    %v1565 = vpack.c.b16 %v1085, %v1083
    %v1566 = vpack.c.b16 %v1088, %v1086
    %v1567 = vpack.c.b16 %v1089, %v1087
    %v1568 = vpack.c.b16 %v1092, %v1090
    %v1569 = vpack.c.b16 %v1093, %v1091
    %v1570 = vpack.c.b16 %v1096, %v1094
    %v1571 = vpack.c.b16 %v1097, %v1095
    %v1572 = vpack.c.b16 %v1100, %v1098
    %v1573 = vpack.c.b16 %v1101, %v1099
    %v1574 = vpack.c.b16 %v1104, %v1102
    %v1575 = vpack.c.b16 %v1105, %v1103
    %v1576 = vpack.c.b16 %v1108, %v1106
    %v1577 = vpack.c.b16 %v1109, %v1107
    %v1578 = vpack.c.b16 %v1112, %v1110
    %v1579 = vpack.c.b16 %v1113, %v1111
    %v1580 = vpack.c.b16 %v1116, %v1114
    %v1581 = vpack.c.b16 %v1117, %v1115
    %v1582 = vpack.c.b16 %v1120, %v1118
    %v1583 = vpack.c.b16 %v1121, %v1119
    %v1584 = vpack.c.b16 %v1124, %v1122
    %v1585 = vpack.c.b16 %v1125, %v1123
    %v1586 = vpack.c.b16 %v1128, %v1126
    %v1587 = vpack.c.b16 %v1129, %v1127
    %v1588 = vpack.c.b16 %v1132, %v1130
    %v1589 = vpack.c.b16 %v1133, %v1131
    %v1590 = vpack.c.b16 %v1136, %v1134
    %v1591 = vpack.c.b16 %v1137, %v1135
    %v1592 = vpack.c.b16 %v1140, %v1138
    %v1593 = vpack.c.b16 %v1141, %v1139
    %v1594 = vpack.c.b16 %v1144, %v1142
    %v1595 = vpack.c.b16 %v1145, %v1143
    %v1596 = vpack.c.b16 %v1148, %v1146
    %v1597 = vpack.c.b16 %v1149, %v1147
    %v1598 = vpack.c.b16 %v1152, %v1150
    %v1599 = vpack.c.b16 %v1153, %v1151
    %v1600 = vpack.c.b16 %v1156, %v1154
    %v1601 = vpack.c.b16 %v1157, %v1155
    %v1602 = vpack.c.b16 %v1160, %v1158
    %v1603 = vpack.c.b16 %v1161, %v1159
    %v1604 = vpack.c.b16 %v1164, %v1162
    %v1605 = vpack.c.b16 %v1165, %v1163
    %v1606 = vpack.c.b16 %v1168, %v1166
    %v1607 = vpack.c.b16 %v1169, %v1167
    %v1608 = vpack.c.b16 %v1172, %v1170
    %v1609 = vpack.c.b16 %v1173, %v1171
    %v1610 = vpack.c.b16 %v1176, %v1174
    %v1611 = vpack.c.b16 %v1177, %v1175
    %v1612 = vpack.c.b16 %v1180, %v1178
    %v1613 = vpack.c.b16 %v1181, %v1179
    %v1614 = vpack.c.b16 %v1184, %v1182
    %v1615 = vpack.c.b16 %v1185, %v1183
    %v1616 = vpack.c.b16 %v1188, %v1186
    %v1617 = vpack.c.b16 %v1189, %v1187
    %v1618 = vpack.c.b16 %v1192, %v1190
    %v1619 = vpack.c.b16 %v1193, %v1191
    %v1620 = vpack.c.b16 %v1196, %v1194
    %v1621 = vpack.c.b16 %v1197, %v1195
    %v1622 = vpack.c.b16 %v1200, %v1198
    %v1623 = vpack.c.b16 %v1201, %v1199
    %v1624 = vpack.c.b16 %v1204, %v1202
    %v1625 = vpack.c.b16 %v1205, %v1203
    %v1626 = vpack.c.b16 %v1208, %v1206
    %v1627 = vpack.c.b16 %v1209, %v1207
    %v1628 = vpack.c.b16 %v1212, %v1210
    %v1629 = vpack.c.b16 %v1213, %v1211
    %v1630 = vpack.c.b16 %v1216, %v1214
    %v1631 = vpack.c.b16 %v1217, %v1215
    %v1632 = vpack.c.b16 %v1220, %v1218
    %v1633 = vpack.c.b16 %v1221, %v1219
    %v1634 = vpack.c.b16 %v1224, %v1222
    %v1635 = vpack.c.b16 %v1225, %v1223
    %v1636 = vpack.c.b16 %v1228, %v1226
    %v1637 = vpack.c.b16 %v1229, %v1227
    %v1638 = vpack.c.b16 %v1232, %v1230
    %v1639 = vpack.c.b16 %v1233, %v1231
    %v1640 = vpack.c.b16 %v1236, %v1234
    %v1641 = vpack.c.b16 %v1237, %v1235
    %v1642 = vpack.c.b16 %v1240, %v1238
    %v1643 = vpack.c.b16 %v1241, %v1239
    %v1644 = vpack.c.b16 %v1244, %v1242
    %v1645 = vpack.c.b16 %v1245, %v1243
    %v1646 = vpack.c.b16 %v1248, %v1246
    %v1647 = vpack.c.b16 %v1249, %v1247
    %v1648 = vpack.c.b16 %v1252, %v1250
    %v1649 = vpack.c.b16 %v1253, %v1251
    %v1650 = vpack.c.b16 %v1256, %v1254
    %v1651 = vpack.c.b16 %v1257, %v1255
    %v1652 = vpack.c.b16 %v1260, %v1258
    %v1653 = vpack.c.b16 %v1261, %v1259
    %v1654 = vpack.c.b16 %v1264, %v1262
    %v1655 = vpack.c.b16 %v1265, %v1263
    %v1656 = vpack.c.b16 %v1268, %v1266
    %v1657 = vpack.c.b16 %v1269, %v1267
    %v1658 = vpack.c.b16 %v1272, %v1270
    %v1659 = vpack.c.b16 %v1273, %v1271
    %v1660 = vpack.c.b16 %v1276, %v1274
    %v1661 = vpack.c.b16 %v1277, %v1275
    %v1662 = vpack.c.b16 %v1280, %v1278
    %v1663 = vpack.c.b16 %v1281, %v1279
    %v1664 = vpack.c.b16 %v1284, %v1282
    %v1665 = vpack.c.b16 %v1285, %v1283
    %v1666 = vpack.c.b16 %v1288, %v1286
    %v1667 = vpack.c.b16 %v1289, %v1287
    %v1668 = vpack.c.b16 %v1292, %v1290
    %v1669 = vpack.c.b16 %v1293, %v1291
    %v1670 = vpack.c.b16 %v1296, %v1294
    %v1671 = vpack.c.b16 %v1297, %v1295
    %v1672 = vpack.c.b16 %v1300, %v1298
    %v1673 = vpack.c.b16 %v1301, %v1299
    %v1674 = vpack.c.b16 %v1304, %v1302
    %v1675 = vpack.c.b16 %v1305, %v1303
    %v1676 = vpack.c.b16 %v1308, %v1306
    %v1677 = vpack.c.b16 %v1309, %v1307
    %v1678 = vpack.c.b16 %v1312, %v1310
    %v1679 = vpack.c.b16 %v1313, %v1311
    %v1680 = vpack.c.b16 %v1316, %v1314
    %v1681 = vpack.c.b16 %v1317, %v1315
    %v1682 = vpack.c.b16 %v1320, %v1318
    %v1683 = vpack.c.b16 %v1321, %v1319
    %v1684 = vpack.c.b16 %v1324, %v1322
    %v1685 = vpack.c.b16 %v1325, %v1323
    %v1686 = vpack.c.b16 %v1328, %v1326
    %v1687 = vpack.c.b16 %v1329, %v1327
    %v1688 = vpack.c.b16 %v1332, %v1330
    %v1689 = vpack.c.b16 %v1333, %v1331
    %v1690 = vpack.c.b16 %v1336, %v1334
    %v1691 = vpack.c.b16 %v1337, %v1335
    %v1692 = vpack.c.b16 %v1340, %v1338
    %v1693 = vpack.c.b16 %v1341, %v1339
    %v1694 = vpack.c.b16 %v1344, %v1342
    %v1695 = vpack.c.b16 %v1345, %v1343
    %v1696 = vpack.c.b16 %v1348, %v1346
    %v1697 = vpack.c.b16 %v1349, %v1347
    %v1698 = vpack.c.b16 %v1352, %v1350
    %v1699 = vpack.c.b16 %v1353, %v1351
    %v1700 = vpack.c.b16 %v1356, %v1354
    %v1701 = vpack.c.b16 %v1357, %v1355
    %v1702 = vpack.c.b16 %v1360, %v1358
    %v1703 = vpack.c.b16 %v1361, %v1359
    %v1704 = vpack.c.b16 %v1364, %v1362
    %v1705 = vpack.c.b16 %v1365, %v1363
    %v1706 = vpack.c.b16 %v1368, %v1366
    %v1707 = vpack.c.b16 %v1369, %v1367
    %v1708 = vpack.c.b16 %v1372, %v1370
    %v1709 = vpack.c.b16 %v1373, %v1371
    %v1710 = vpack.c.b16 %v1376, %v1374
    %v1711 = vpack.c.b16 %v1377, %v1375
    %v1712 = vpack.c.b16 %v1380, %v1378
    %v1713 = vpack.c.b16 %v1381, %v1379
    %v1714 = vpack.c.b16 %v1384, %v1382
    %v1715 = vpack.c.b16 %v1385, %v1383
    %v1716 = vpack.c.b16 %v1388, %v1386
    %v1717 = vpack.c.b16 %v1389, %v1387
    %v1718 = vpack.c.b16 %v1392, %v1390
    %v1719 = vpack.c.b16 %v1393, %v1391
    %v1720 = vpack.c.b16 %v1396, %v1394
    %v1721 = vpack.c.b16 %v1397, %v1395
    %v1722 = vpack.c.b16 %v1400, %v1398
    %v1723 = vpack.c.b16 %v1401, %v1399
    %v1724 = vpack.c.b16 %v1404, %v1402
    %v1725 = vpack.c.b16 %v1405, %v1403
    %v1726 = vpack.c.b16 %v1408, %v1406
    %v1727 = vpack.c.b16 %v1409, %v1407
    %v1728 = vpack.c.b16 %v1412, %v1410
    %v1729 = vpack.c.b16 %v1413, %v1411
    %v1730 = vpack.c.b16 %v1416, %v1414
    %v1731 = vpack.c.b16 %v1417, %v1415
    %v1732 = vpack.c.b16 %v1420, %v1418
    %v1733 = vpack.c.b16 %v1421, %v1419
    %v1734 = vpack.c.b16 %v1424, %v1422
    %v1735 = vpack.c.b16 %v1425, %v1423
    %v1736 = vpack.c.b16 %v1428, %v1426
    %v1737 = vpack.c.b16 %v1429, %v1427
    %v1738 = vpack.c.b16 %v1432, %v1430
    %v1739 = vpack.c.b16 %v1433, %v1431
    %v1740 = vpack.c.b16 %v1436, %v1434
    %v1741 = vpack.c.b16 %v1437, %v1435
    %v1742 = vpack.c.b16 %v1440, %v1438
    %v1743 = vpack.c.b16 %v1441, %v1439
    %v1744 = vpack.c.b16 %v1444, %v1442
    %v1745 = vpack.c.b16 %v1445, %v1443
    %v1746 = vpack.c.b16 %v1448, %v1446
    %v1747 = vpack.c.b16 %v1449, %v1447
    %v1748 = vpack.c.b16 %v1452, %v1450
    %v1749 = vpack.c.b16 %v1453, %v1451
    %v1750 = vpack.c.b16 %v1456, %v1454
    %v1751 = vpack.c.b16 %v1457, %v1455
    %v1752 = vpack.c.b16 %v1460, %v1458
    %v1753 = vpack.c.b16 %v1461, %v1459
    %v1754 = vpack.c.b16 %v1464, %v1462
    %v1755 = vpack.c.b16 %v1465, %v1463
    %v1756 = vpack.c.b16 %v1468, %v1466
    %v1757 = vpack.c.b16 %v1469, %v1467
    %v1758 = vpack.c.b16 %v1472, %v1470
    %v1759 = vpack.c.b16 %v1473, %v1471
    %v1760 = vpack.c.b16 %v1476, %v1474
    %v1761 = vpack.c.b16 %v1477, %v1475
    %v1762 = vpack.c.b16 %v1480, %v1478
    %v1763 = vpack.c.b16 %v1481, %v1479
    %v1764 = vpack.c.b16 %v1484, %v1482
    %v1765 = vpack.c.b16 %v1485, %v1483
    %v1766 = vpack.c.b16 %v1488, %v1486
    %v1767 = vpack.c.b16 %v1489, %v1487
    %v1768 = vpack.c.b16 %v1492, %v1490
    %v1769 = vpack.c.b16 %v1493, %v1491
    %v1770 = vpack.c.b16 %v1496, %v1494
    %v1771 = vpack.c.b16 %v1497, %v1495
    %v1772 = vpack.c.b16 %v1500, %v1498
    %v1773 = vpack.c.b16 %v1501, %v1499
    %v1774 = vpack.c.b16 %v1504, %v1502
    %v1775 = vpack.c.b16 %v1505, %v1503
    %v1776 = vpack.c.b16 %v1508, %v1506
    %v1777 = vpack.c.b16 %v1509, %v1507
    %v1778 = vpack.c.b16 %v1512, %v1510
    %v1779 = vpack.c.b16 %v1513, %v1511
    %v1780 = vpack.c.b16 %v1516, %v1514
    %v1781 = vpack.c.b16 %v1517, %v1515
    %v1782 = vpack.c.b16 %v1520, %v1518
    %v1783 = vpack.c.b16 %v1521, %v1519
    %v1784 = vpack.c.b16 %v1524, %v1522
    %v1785 = vpack.c.b16 %v1525, %v1523
    %v1786 = vpack.c.b16 %v1528, %v1526
    %v1787 = vpack.c.b16 %v1529, %v1527
    %v1788 = vpack.c.b16 %v1532, %v1530
    %v1789 = vpack.c.b16 %v1533, %v1531
    %2046 = vmatpush.bf16.msra.mxu0 %v1548
    %2047 = vmatpush.bf16.msra.mxu0 %v1546
    %2048 = vmatpush.bf16.msra.mxu0 %v1544
    %2049 = vmatpush.bf16.msra.mxu0 %v1542
    %2050 = vmatpush.bf16.msra.mxu0 %v1540
    %2051 = vmatpush.bf16.msra.mxu0 %v1538
    %2052 = vmatpush.bf16.msra.mxu0 %v1536
    %2053 = vmatpush.bf16.msra.mxu0 %v1534
    %2054 = vmatmul.bf16.gmra.mxu0 %v734
    %v2055 = vpop.f32.mrf.mxu0
    %v2056 = vadd.f32 %v682, %v2055
    %v2057 = vpop.f32.mrf.mxu0
    %v2058 = vadd.f32 %v682, %v2057
    %2059 = vdwg.mxu0
    %2060 = vmatpush.bf16.msra.mxu0 %v1564
    %2061 = vmatpush.bf16.msra.mxu0 %v1562
    %2062 = vmatpush.bf16.msra.mxu0 %v1560
    %2063 = vmatpush.bf16.msra.mxu0 %v1558
    %2064 = vmatpush.bf16.msra.mxu0 %v1556
    %2065 = vmatpush.bf16.msra.mxu0 %v1554
    %2066 = vmatpush.bf16.msra.mxu0 %v1552
    %2067 = vmatpush.bf16.msra.mxu0 %v1550
    %2068 = vmatmul.bf16.gmra.mxu0 %v735
    %v2069 = vpop.f32.mrf.mxu0
    %v2070 = vadd.f32 %v2056, %v2069
    %v2071 = vpop.f32.mrf.mxu0
    %v2072 = vadd.f32 %v2058, %v2071
    %2073 = vdwg.mxu0
    %2074 = vmatpush.bf16.msra.mxu0 %v1580
    %2075 = vmatpush.bf16.msra.mxu0 %v1578
    %2076 = vmatpush.bf16.msra.mxu0 %v1576
    %2077 = vmatpush.bf16.msra.mxu0 %v1574
    %2078 = vmatpush.bf16.msra.mxu0 %v1572
    %2079 = vmatpush.bf16.msra.mxu0 %v1570
    %2080 = vmatpush.bf16.msra.mxu0 %v1568
    %2081 = vmatpush.bf16.msra.mxu0 %v1566
    %2082 = vmatmul.bf16.gmra.mxu0 %v736
    %v2083 = vpop.f32.mrf.mxu0
    %v2084 = vadd.f32 %v2070, %v2083
    %v2085 = vpop.f32.mrf.mxu0
    %v2086 = vadd.f32 %v2072, %v2085
    %2087 = vdwg.mxu0
    %2088 = vmatpush.bf16.msra.mxu0 %v1596
    %2089 = vmatpush.bf16.msra.mxu0 %v1594
    %2090 = vmatpush.bf16.msra.mxu0 %v1592
    %2091 = vmatpush.bf16.msra.mxu0 %v1590
    %2092 = vmatpush.bf16.msra.mxu0 %v1588
    %2093 = vmatpush.bf16.msra.mxu0 %v1586
    %2094 = vmatpush.bf16.msra.mxu0 %v1584
    %2095 = vmatpush.bf16.msra.mxu0 %v1582
    %2096 = vmatmul.bf16.gmra.mxu0 %v737
    %v2097 = vpop.f32.mrf.mxu0
    %v2098 = vadd.f32 %v2084, %v2097
    %v2099 = vpop.f32.mrf.mxu0
    %v2100 = vadd.f32 %v2086, %v2099
    %2101 = vdwg.mxu0
    %2102 = vmatpush.bf16.msra.mxu0 %v1612
    %2103 = vmatpush.bf16.msra.mxu0 %v1610
    %2104 = vmatpush.bf16.msra.mxu0 %v1608
    %2105 = vmatpush.bf16.msra.mxu0 %v1606
    %2106 = vmatpush.bf16.msra.mxu0 %v1604
    %2107 = vmatpush.bf16.msra.mxu0 %v1602
    %2108 = vmatpush.bf16.msra.mxu0 %v1600
    %2109 = vmatpush.bf16.msra.mxu0 %v1598
    %2110 = vmatmul.bf16.gmra.mxu0 %v738
    %v2111 = vpop.f32.mrf.mxu0
    %v2112 = vadd.f32 %v2098, %v2111
    %v2113 = vpop.f32.mrf.mxu0
    %v2114 = vadd.f32 %v2100, %v2113
    %2115 = vdwg.mxu0
    %2116 = vmatpush.bf16.msra.mxu0 %v1628
    %2117 = vmatpush.bf16.msra.mxu0 %v1626
    %2118 = vmatpush.bf16.msra.mxu0 %v1624
    %2119 = vmatpush.bf16.msra.mxu0 %v1622
    %2120 = vmatpush.bf16.msra.mxu0 %v1620
    %2121 = vmatpush.bf16.msra.mxu0 %v1618
    %2122 = vmatpush.bf16.msra.mxu0 %v1616
    %2123 = vmatpush.bf16.msra.mxu0 %v1614
    %2124 = vmatmul.bf16.gmra.mxu0 %v739
    %v2125 = vpop.f32.mrf.mxu0
    %v2126 = vadd.f32 %v2112, %v2125
    %v2127 = vpop.f32.mrf.mxu0
    %v2128 = vadd.f32 %v2114, %v2127
    %2129 = vdwg.mxu0
    %2130 = vmatpush.bf16.msra.mxu0 %v1644
    %2131 = vmatpush.bf16.msra.mxu0 %v1642
    %2132 = vmatpush.bf16.msra.mxu0 %v1640
    %2133 = vmatpush.bf16.msra.mxu0 %v1638
    %2134 = vmatpush.bf16.msra.mxu0 %v1636
    %2135 = vmatpush.bf16.msra.mxu0 %v1634
    %2136 = vmatpush.bf16.msra.mxu0 %v1632
    %2137 = vmatpush.bf16.msra.mxu0 %v1630
    %2138 = vmatmul.bf16.gmra.mxu0 %v740
    %v2139 = vpop.f32.mrf.mxu0
    %v2140 = vadd.f32 %v2126, %v2139
    %v2141 = vpop.f32.mrf.mxu0
    %v2142 = vadd.f32 %v2128, %v2141
    %2143 = vdwg.mxu0
    %2144 = vmatpush.bf16.msra.mxu0 %v1660
    %2145 = vmatpush.bf16.msra.mxu0 %v1658
    %2146 = vmatpush.bf16.msra.mxu0 %v1656
    %2147 = vmatpush.bf16.msra.mxu0 %v1654
    %2148 = vmatpush.bf16.msra.mxu0 %v1652
    %2149 = vmatpush.bf16.msra.mxu0 %v1650
    %2150 = vmatpush.bf16.msra.mxu0 %v1648
    %2151 = vmatpush.bf16.msra.mxu0 %v1646
    %2152 = vmatmul.bf16.gmra.mxu0 %v741
    %v2153 = vpop.f32.mrf.mxu0
    %v2154 = vadd.f32 %v2140, %v2153
    %v2155 = vpop.f32.mrf.mxu0
    %v2156 = vadd.f32 %v2142, %v2155
    %2157 = vdwg.mxu0
    %2158 = vmatpush.bf16.msra.mxu0 %v1676
    %2159 = vmatpush.bf16.msra.mxu0 %v1674
    %2160 = vmatpush.bf16.msra.mxu0 %v1672
    %2161 = vmatpush.bf16.msra.mxu0 %v1670
    %2162 = vmatpush.bf16.msra.mxu0 %v1668
    %2163 = vmatpush.bf16.msra.mxu0 %v1666
    %2164 = vmatpush.bf16.msra.mxu0 %v1664
    %2165 = vmatpush.bf16.msra.mxu0 %v1662
    %2166 = vmatmul.bf16.gmra.mxu0 %v742
    %v2167 = vpop.f32.mrf.mxu0
    %v2168 = vadd.f32 %v2154, %v2167
    %v2169 = vpop.f32.mrf.mxu0
    %v2170 = vadd.f32 %v2156, %v2169
    %2171 = vdwg.mxu0
    %2172 = vmatpush.bf16.msra.mxu0 %v1692
    %2173 = vmatpush.bf16.msra.mxu0 %v1690
    %2174 = vmatpush.bf16.msra.mxu0 %v1688
    %2175 = vmatpush.bf16.msra.mxu0 %v1686
    %2176 = vmatpush.bf16.msra.mxu0 %v1684
    %2177 = vmatpush.bf16.msra.mxu0 %v1682
    %2178 = vmatpush.bf16.msra.mxu0 %v1680
    %2179 = vmatpush.bf16.msra.mxu0 %v1678
    %2180 = vmatmul.bf16.gmra.mxu0 %v743
    %v2181 = vpop.f32.mrf.mxu0
    %v2182 = vadd.f32 %v2168, %v2181
    %v2183 = vpop.f32.mrf.mxu0
    %v2184 = vadd.f32 %v2170, %v2183
    %2185 = vdwg.mxu0
    %2186 = vmatpush.bf16.msra.mxu0 %v1708
    %2187 = vmatpush.bf16.msra.mxu0 %v1706
    %2188 = vmatpush.bf16.msra.mxu0 %v1704
    %2189 = vmatpush.bf16.msra.mxu0 %v1702
    %2190 = vmatpush.bf16.msra.mxu0 %v1700
    %2191 = vmatpush.bf16.msra.mxu0 %v1698
    %2192 = vmatpush.bf16.msra.mxu0 %v1696
    %2193 = vmatpush.bf16.msra.mxu0 %v1694
    %2194 = vmatmul.bf16.gmra.mxu0 %v744
    %v2195 = vpop.f32.mrf.mxu0
    %v2196 = vadd.f32 %v2182, %v2195
    %v2197 = vpop.f32.mrf.mxu0
    %v2198 = vadd.f32 %v2184, %v2197
    %2199 = vdwg.mxu0
    %2200 = vmatpush.bf16.msra.mxu0 %v1724
    %2201 = vmatpush.bf16.msra.mxu0 %v1722
    %2202 = vmatpush.bf16.msra.mxu0 %v1720
    %2203 = vmatpush.bf16.msra.mxu0 %v1718
    %2204 = vmatpush.bf16.msra.mxu0 %v1716
    %2205 = vmatpush.bf16.msra.mxu0 %v1714
    %2206 = vmatpush.bf16.msra.mxu0 %v1712
    %2207 = vmatpush.bf16.msra.mxu0 %v1710
    %2208 = vmatmul.bf16.gmra.mxu0 %v745
    %v2209 = vpop.f32.mrf.mxu0
    %v2210 = vadd.f32 %v2196, %v2209
    %v2211 = vpop.f32.mrf.mxu0
    %v2212 = vadd.f32 %v2198, %v2211
    %2213 = vdwg.mxu0
    %2214 = vmatpush.bf16.msra.mxu0 %v1740
    %2215 = vmatpush.bf16.msra.mxu0 %v1738
    %2216 = vmatpush.bf16.msra.mxu0 %v1736
    %2217 = vmatpush.bf16.msra.mxu0 %v1734
    %2218 = vmatpush.bf16.msra.mxu0 %v1732
    %2219 = vmatpush.bf16.msra.mxu0 %v1730
    %2220 = vmatpush.bf16.msra.mxu0 %v1728
    %2221 = vmatpush.bf16.msra.mxu0 %v1726
    %2222 = vmatmul.bf16.gmra.mxu0 %v746
    %v2223 = vpop.f32.mrf.mxu0
    %v2224 = vadd.f32 %v2210, %v2223
    %v2225 = vpop.f32.mrf.mxu0
    %v2226 = vadd.f32 %v2212, %v2225
    %2227 = vdwg.mxu0
    %2228 = vmatpush.bf16.msra.mxu0 %v1756
    %2229 = vmatpush.bf16.msra.mxu0 %v1754
    %2230 = vmatpush.bf16.msra.mxu0 %v1752
    %2231 = vmatpush.bf16.msra.mxu0 %v1750
    %2232 = vmatpush.bf16.msra.mxu0 %v1748
    %2233 = vmatpush.bf16.msra.mxu0 %v1746
    %2234 = vmatpush.bf16.msra.mxu0 %v1744
    %2235 = vmatpush.bf16.msra.mxu0 %v1742
    %2236 = vmatmul.bf16.gmra.mxu0 %v747
    %v2237 = vpop.f32.mrf.mxu0
    %v2238 = vadd.f32 %v2224, %v2237
    %v2239 = vpop.f32.mrf.mxu0
    %v2240 = vadd.f32 %v2226, %v2239
    %2241 = vdwg.mxu0
    %2242 = vmatpush.bf16.msra.mxu0 %v1772
    %2243 = vmatpush.bf16.msra.mxu0 %v1770
    %2244 = vmatpush.bf16.msra.mxu0 %v1768
    %2245 = vmatpush.bf16.msra.mxu0 %v1766
    %2246 = vmatpush.bf16.msra.mxu0 %v1764
    %2247 = vmatpush.bf16.msra.mxu0 %v1762
    %2248 = vmatpush.bf16.msra.mxu0 %v1760
    %2249 = vmatpush.bf16.msra.mxu0 %v1758
    %2250 = vmatmul.bf16.gmra.mxu0 %v748
    %v2251 = vpop.f32.mrf.mxu0
    %v2252 = vadd.f32 %v2238, %v2251
    %v2253 = vpop.f32.mrf.mxu0
    %v2254 = vadd.f32 %v2240, %v2253
    %2255 = vdwg.mxu0
    %2256 = vmatpush.bf16.msra.mxu0 %v1788
    %2257 = vmatpush.bf16.msra.mxu0 %v1786
    %2258 = vmatpush.bf16.msra.mxu0 %v1784
    %2259 = vmatpush.bf16.msra.mxu0 %v1782
    %2260 = vmatpush.bf16.msra.mxu0 %v1780
    %2261 = vmatpush.bf16.msra.mxu0 %v1778
    %2262 = vmatpush.bf16.msra.mxu0 %v1776
    %2263 = vmatpush.bf16.msra.mxu0 %v1774
    %2264 = vmatmul.bf16.gmra.mxu0 %v749
    %v2265 = vpop.f32.mrf.mxu0
    %v2266 = vadd.f32 %v2252, %v2265
    %v2267 = vpop.f32.mrf.mxu0
    %v2268 = vadd.f32 %v2254, %v2267
    %2269 = vdwg.mxu0
    %2270 = vmatpush.bf16.msra.mxu0 %v1549
    %2271 = vmatpush.bf16.msra.mxu0 %v1547
    %2272 = vmatpush.bf16.msra.mxu0 %v1545
    %2273 = vmatpush.bf16.msra.mxu0 %v1543
    %2274 = vmatpush.bf16.msra.mxu0 %v1541
    %2275 = vmatpush.bf16.msra.mxu0 %v1539
    %2276 = vmatpush.bf16.msra.mxu0 %v1537
    %2277 = vmatpush.bf16.msra.mxu0 %v1535
    %2278 = vmatmul.bf16.gmra.mxu0 %v734
    %v2279 = vpop.f32.mrf.mxu0
    %v2280 = vadd.f32 %v683, %v2279
    %v2281 = vpop.f32.mrf.mxu0
    %v2282 = vadd.f32 %v683, %v2281
    %2283 = vdwg.mxu0
    %2284 = vmatpush.bf16.msra.mxu0 %v1565
    %2285 = vmatpush.bf16.msra.mxu0 %v1563
    %2286 = vmatpush.bf16.msra.mxu0 %v1561
    %2287 = vmatpush.bf16.msra.mxu0 %v1559
    %2288 = vmatpush.bf16.msra.mxu0 %v1557
    %2289 = vmatpush.bf16.msra.mxu0 %v1555
    %2290 = vmatpush.bf16.msra.mxu0 %v1553
    %2291 = vmatpush.bf16.msra.mxu0 %v1551
    %2292 = vmatmul.bf16.gmra.mxu0 %v735
    %v2293 = vpop.f32.mrf.mxu0
    %v2294 = vadd.f32 %v2280, %v2293
    %v2295 = vpop.f32.mrf.mxu0
    %v2296 = vadd.f32 %v2282, %v2295
    %2297 = vdwg.mxu0
    %2298 = vmatpush.bf16.msra.mxu0 %v1581
    %2299 = vmatpush.bf16.msra.mxu0 %v1579
    %2300 = vmatpush.bf16.msra.mxu0 %v1577
    %2301 = vmatpush.bf16.msra.mxu0 %v1575
    %2302 = vmatpush.bf16.msra.mxu0 %v1573
    %2303 = vmatpush.bf16.msra.mxu0 %v1571
    %2304 = vmatpush.bf16.msra.mxu0 %v1569
    %2305 = vmatpush.bf16.msra.mxu0 %v1567
    %2306 = vmatmul.bf16.gmra.mxu0 %v736
    %v2307 = vpop.f32.mrf.mxu0
    %v2308 = vadd.f32 %v2294, %v2307
    %v2309 = vpop.f32.mrf.mxu0
    %v2310 = vadd.f32 %v2296, %v2309
    %2311 = vdwg.mxu0
    %2312 = vmatpush.bf16.msra.mxu0 %v1597
    %2313 = vmatpush.bf16.msra.mxu0 %v1595
    %2314 = vmatpush.bf16.msra.mxu0 %v1593
    %2315 = vmatpush.bf16.msra.mxu0 %v1591
    %2316 = vmatpush.bf16.msra.mxu0 %v1589
    %2317 = vmatpush.bf16.msra.mxu0 %v1587
    %2318 = vmatpush.bf16.msra.mxu0 %v1585
    %2319 = vmatpush.bf16.msra.mxu0 %v1583
    %2320 = vmatmul.bf16.gmra.mxu0 %v737
    %v2321 = vpop.f32.mrf.mxu0
    %v2322 = vadd.f32 %v2308, %v2321
    %v2323 = vpop.f32.mrf.mxu0
    %v2324 = vadd.f32 %v2310, %v2323
    %2325 = vdwg.mxu0
    %2326 = vmatpush.bf16.msra.mxu0 %v1613
    %2327 = vmatpush.bf16.msra.mxu0 %v1611
    %2328 = vmatpush.bf16.msra.mxu0 %v1609
    %2329 = vmatpush.bf16.msra.mxu0 %v1607
    %2330 = vmatpush.bf16.msra.mxu0 %v1605
    %2331 = vmatpush.bf16.msra.mxu0 %v1603
    %2332 = vmatpush.bf16.msra.mxu0 %v1601
    %2333 = vmatpush.bf16.msra.mxu0 %v1599
    %2334 = vmatmul.bf16.gmra.mxu0 %v738
    %v2335 = vpop.f32.mrf.mxu0
    %v2336 = vadd.f32 %v2322, %v2335
    %v2337 = vpop.f32.mrf.mxu0
    %v2338 = vadd.f32 %v2324, %v2337
    %2339 = vdwg.mxu0
    %2340 = vmatpush.bf16.msra.mxu0 %v1629
    %2341 = vmatpush.bf16.msra.mxu0 %v1627
    %2342 = vmatpush.bf16.msra.mxu0 %v1625
    %2343 = vmatpush.bf16.msra.mxu0 %v1623
    %2344 = vmatpush.bf16.msra.mxu0 %v1621
    %2345 = vmatpush.bf16.msra.mxu0 %v1619
    %2346 = vmatpush.bf16.msra.mxu0 %v1617
    %2347 = vmatpush.bf16.msra.mxu0 %v1615
    %2348 = vmatmul.bf16.gmra.mxu0 %v739
    %v2349 = vpop.f32.mrf.mxu0
    %v2350 = vadd.f32 %v2336, %v2349
    %v2351 = vpop.f32.mrf.mxu0
    %v2352 = vadd.f32 %v2338, %v2351
    %2353 = vdwg.mxu0
    %2354 = vmatpush.bf16.msra.mxu0 %v1645
    %2355 = vmatpush.bf16.msra.mxu0 %v1643
    %2356 = vmatpush.bf16.msra.mxu0 %v1641
    %2357 = vmatpush.bf16.msra.mxu0 %v1639
    %2358 = vmatpush.bf16.msra.mxu0 %v1637
    %2359 = vmatpush.bf16.msra.mxu0 %v1635
    %2360 = vmatpush.bf16.msra.mxu0 %v1633
    %2361 = vmatpush.bf16.msra.mxu0 %v1631
    %2362 = vmatmul.bf16.gmra.mxu0 %v740
    %v2363 = vpop.f32.mrf.mxu0
    %v2364 = vadd.f32 %v2350, %v2363
    %v2365 = vpop.f32.mrf.mxu0
    %v2366 = vadd.f32 %v2352, %v2365
    %2367 = vdwg.mxu0
    %2368 = vmatpush.bf16.msra.mxu0 %v1661
    %2369 = vmatpush.bf16.msra.mxu0 %v1659
    %2370 = vmatpush.bf16.msra.mxu0 %v1657
    %2371 = vmatpush.bf16.msra.mxu0 %v1655
    %2372 = vmatpush.bf16.msra.mxu0 %v1653
    %2373 = vmatpush.bf16.msra.mxu0 %v1651
    %2374 = vmatpush.bf16.msra.mxu0 %v1649
    %2375 = vmatpush.bf16.msra.mxu0 %v1647
    %2376 = vmatmul.bf16.gmra.mxu0 %v741
    %v2377 = vpop.f32.mrf.mxu0
    %v2378 = vadd.f32 %v2364, %v2377
    %v2379 = vpop.f32.mrf.mxu0
    %v2380 = vadd.f32 %v2366, %v2379
    %2381 = vdwg.mxu0
    %2382 = vmatpush.bf16.msra.mxu0 %v1677
    %2383 = vmatpush.bf16.msra.mxu0 %v1675
    %2384 = vmatpush.bf16.msra.mxu0 %v1673
    %2385 = vmatpush.bf16.msra.mxu0 %v1671
    %2386 = vmatpush.bf16.msra.mxu0 %v1669
    %2387 = vmatpush.bf16.msra.mxu0 %v1667
    %2388 = vmatpush.bf16.msra.mxu0 %v1665
    %2389 = vmatpush.bf16.msra.mxu0 %v1663
    %2390 = vmatmul.bf16.gmra.mxu0 %v742
    %v2391 = vpop.f32.mrf.mxu0
    %v2392 = vadd.f32 %v2378, %v2391
    %v2393 = vpop.f32.mrf.mxu0
    %v2394 = vadd.f32 %v2380, %v2393
    %2395 = vdwg.mxu0
    %2396 = vmatpush.bf16.msra.mxu0 %v1693
    %2397 = vmatpush.bf16.msra.mxu0 %v1691
    %2398 = vmatpush.bf16.msra.mxu0 %v1689
    %2399 = vmatpush.bf16.msra.mxu0 %v1687
    %2400 = vmatpush.bf16.msra.mxu0 %v1685
    %2401 = vmatpush.bf16.msra.mxu0 %v1683
    %2402 = vmatpush.bf16.msra.mxu0 %v1681
    %2403 = vmatpush.bf16.msra.mxu0 %v1679
    %2404 = vmatmul.bf16.gmra.mxu0 %v743
    %v2405 = vpop.f32.mrf.mxu0
    %v2406 = vadd.f32 %v2392, %v2405
    %v2407 = vpop.f32.mrf.mxu0
    %v2408 = vadd.f32 %v2394, %v2407
    %2409 = vdwg.mxu0
    %2410 = vmatpush.bf16.msra.mxu0 %v1709
    %2411 = vmatpush.bf16.msra.mxu0 %v1707
    %2412 = vmatpush.bf16.msra.mxu0 %v1705
    %2413 = vmatpush.bf16.msra.mxu0 %v1703
    %2414 = vmatpush.bf16.msra.mxu0 %v1701
    %2415 = vmatpush.bf16.msra.mxu0 %v1699
    %2416 = vmatpush.bf16.msra.mxu0 %v1697
    %2417 = vmatpush.bf16.msra.mxu0 %v1695
    %2418 = vmatmul.bf16.gmra.mxu0 %v744
    %v2419 = vpop.f32.mrf.mxu0
    %v2420 = vadd.f32 %v2406, %v2419
    %v2421 = vpop.f32.mrf.mxu0
    %v2422 = vadd.f32 %v2408, %v2421
    %2423 = vdwg.mxu0
    %2424 = vmatpush.bf16.msra.mxu0 %v1725
    %2425 = vmatpush.bf16.msra.mxu0 %v1723
    %2426 = vmatpush.bf16.msra.mxu0 %v1721
    %2427 = vmatpush.bf16.msra.mxu0 %v1719
    %2428 = vmatpush.bf16.msra.mxu0 %v1717
    %2429 = vmatpush.bf16.msra.mxu0 %v1715
    %2430 = vmatpush.bf16.msra.mxu0 %v1713
    %2431 = vmatpush.bf16.msra.mxu0 %v1711
    %2432 = vmatmul.bf16.gmra.mxu0 %v745
    %v2433 = vpop.f32.mrf.mxu0
    %v2434 = vadd.f32 %v2420, %v2433
    %v2435 = vpop.f32.mrf.mxu0
    %v2436 = vadd.f32 %v2422, %v2435
    %2437 = vdwg.mxu0
    %2438 = vmatpush.bf16.msra.mxu0 %v1741
    %2439 = vmatpush.bf16.msra.mxu0 %v1739
    %2440 = vmatpush.bf16.msra.mxu0 %v1737
    %2441 = vmatpush.bf16.msra.mxu0 %v1735
    %2442 = vmatpush.bf16.msra.mxu0 %v1733
    %2443 = vmatpush.bf16.msra.mxu0 %v1731
    %2444 = vmatpush.bf16.msra.mxu0 %v1729
    %2445 = vmatpush.bf16.msra.mxu0 %v1727
    %2446 = vmatmul.bf16.gmra.mxu0 %v746
    %v2447 = vpop.f32.mrf.mxu0
    %v2448 = vadd.f32 %v2434, %v2447
    %v2449 = vpop.f32.mrf.mxu0
    %v2450 = vadd.f32 %v2436, %v2449
    %2451 = vdwg.mxu0
    %2452 = vmatpush.bf16.msra.mxu0 %v1757
    %2453 = vmatpush.bf16.msra.mxu0 %v1755
    %2454 = vmatpush.bf16.msra.mxu0 %v1753
    %2455 = vmatpush.bf16.msra.mxu0 %v1751
    %2456 = vmatpush.bf16.msra.mxu0 %v1749
    %2457 = vmatpush.bf16.msra.mxu0 %v1747
    %2458 = vmatpush.bf16.msra.mxu0 %v1745
    %2459 = vmatpush.bf16.msra.mxu0 %v1743
    %2460 = vmatmul.bf16.gmra.mxu0 %v747
    %v2461 = vpop.f32.mrf.mxu0
    %v2462 = vadd.f32 %v2448, %v2461
    %v2463 = vpop.f32.mrf.mxu0
    %v2464 = vadd.f32 %v2450, %v2463
    %2465 = vdwg.mxu0
    %2466 = vmatpush.bf16.msra.mxu0 %v1773
    %2467 = vmatpush.bf16.msra.mxu0 %v1771
    %2468 = vmatpush.bf16.msra.mxu0 %v1769
    %2469 = vmatpush.bf16.msra.mxu0 %v1767
    %2470 = vmatpush.bf16.msra.mxu0 %v1765
    %2471 = vmatpush.bf16.msra.mxu0 %v1763
    %2472 = vmatpush.bf16.msra.mxu0 %v1761
    %2473 = vmatpush.bf16.msra.mxu0 %v1759
    %2474 = vmatmul.bf16.gmra.mxu0 %v748
    %v2475 = vpop.f32.mrf.mxu0
    %v2476 = vadd.f32 %v2462, %v2475
    %v2477 = vpop.f32.mrf.mxu0
    %v2478 = vadd.f32 %v2464, %v2477
    %2479 = vdwg.mxu0
    %2480 = vmatpush.bf16.msra.mxu0 %v1789
    %2481 = vmatpush.bf16.msra.mxu0 %v1787
    %2482 = vmatpush.bf16.msra.mxu0 %v1785
    %2483 = vmatpush.bf16.msra.mxu0 %v1783
    %2484 = vmatpush.bf16.msra.mxu0 %v1781
    %2485 = vmatpush.bf16.msra.mxu0 %v1779
    %2486 = vmatpush.bf16.msra.mxu0 %v1777
    %2487 = vmatpush.bf16.msra.mxu0 %v1775
    %2488 = vmatmul.bf16.gmra.mxu0 %v749
    %v2489 = vpop.f32.mrf.mxu0
    %v2490 = vadd.f32 %v2476, %v2489
    %v2491 = vpop.f32.mrf.mxu0
    %v2492 = vadd.f32 %v2478, %v2491
    %2493 = vdwg.mxu0
    %v2494 = vmul.f32 %v2266, 0.5
    %v2495 = vmul.f32 %v2490, 0.5
    %v2496 = vmul.f32 %v2268, 0.5
    %v2497 = vmul.f32 %v2492, 0.5
    %v2498 = vtanh.pop %v2494
    %v2499 = vtanh.pop %v2495
    %v2500 = vtanh.pop %v2496
    %v2501 = vtanh.pop %v2497
    %v2502 = vmul.f32 %v2498, 0.5
    %v2503 = vmul.f32 %v2499, 0.5
    %v2504 = vmul.f32 %v2500, 0.5
    %v2505 = vmul.f32 %v2501, 0.5
    %v2506 = vadd.f32 %v2502, 0.5
    %v2507 = vadd.f32 %v2503, 0.5
    %v2508 = vadd.f32 %v2504, 0.5
    %v2509 = vadd.f32 %v2505, 0.5
    %v2510 = vpack.c.bf16 %v2508, %v2506
    %v2511 = vpack.c.bf16 %v2509, %v2507
    %v2512 = vld [vmem:[%s2] sm:$0xf]
    %v2513 = vld [vmem:[%s2 + $0x4] sm:$0xf]
    %v2514 = vld [vmem:[%s2 + $0x8] sm:$0xf]
    %v2515 = vld [vmem:[%s2 + $0xc] sm:$0xf]
    %v2516 = vld [vmem:[%s2 + $0x10] sm:$0xf]
    %v2517 = vld [vmem:[%s2 + $0x14] sm:$0xf]
    %v2518 = vld [vmem:[%s2 + $0x18] sm:$0xf]
    %v2519 = vld [vmem:[%s2 + $0x1c] sm:$0xf]
    %v2520 = vld [vmem:[%s2 + $0x20] sm:$0xf]
    %v2521 = vld [vmem:[%s2 + $0x24] sm:$0xf]
    %v2522 = vld [vmem:[%s2 + $0x28] sm:$0xf]
    %v2523 = vld [vmem:[%s2 + $0x2c] sm:$0xf]
    %v2524 = vld [vmem:[%s2 + $0x30] sm:$0xf]
    %v2525 = vld [vmem:[%s2 + $0x34] sm:$0xf]
    %v2526 = vld [vmem:[%s2 + $0x38] sm:$0xf]
    %v2527 = vld [vmem:[%s2 + $0x3c] sm:$0xf]
    %v2528 = vld [vmem:[%s2 + $0x40] sm:$0xf]
    %v2529 = vld [vmem:[%s2 + $0x44] sm:$0xf]
    %v2530 = vld [vmem:[%s2 + $0x48] sm:$0xf]
    %v2531 = vld [vmem:[%s2 + $0x4c] sm:$0xf]
    %v2532 = vld [vmem:[%s2 + $0x50] sm:$0xf]
    %v2533 = vld [vmem:[%s2 + $0x54] sm:$0xf]
    %v2534 = vld [vmem:[%s2 + $0x58] sm:$0xf]
    %v2535 = vld [vmem:[%s2 + $0x5c] sm:$0xf]
    %v2536 = vld [vmem:[%s2 + $0x60] sm:$0xf]
    %v2537 = vld [vmem:[%s2 + $0x64] sm:$0xf]
    %v2538 = vld [vmem:[%s2 + $0x68] sm:$0xf]
    %v2539 = vld [vmem:[%s2 + $0x6c] sm:$0xf]
    %v2540 = vld [vmem:[%s2 + $0x70] sm:$0xf]
    %v2541 = vld [vmem:[%s2 + $0x74] sm:$0xf]
    %v2542 = vld [vmem:[%s2 + $0x78] sm:$0xf]
    %v2543 = vld [vmem:[%s2 + $0x7c] sm:$0xf]
    %v2544 = vld [vmem:[%s3] sm:$0x1]
    %v2546 = vperm.slane %v2544, 0
    %v2580 = vunpack.c.l.b16 %v2512
    %v2581 = vunpack.c.l.b16 %v2513
    %v2582 = vunpack.c.l.b16 %v2514
    %v2583 = vunpack.c.l.b16 %v2515
    %v2584 = vunpack.c.l.b16 %v2516
    %v2585 = vunpack.c.l.b16 %v2517
    %v2586 = vunpack.c.l.b16 %v2518
    %v2587 = vunpack.c.l.b16 %v2519
    %v2588 = vunpack.c.l.b16 %v2520
    %v2589 = vunpack.c.l.b16 %v2521
    %v2590 = vunpack.c.l.b16 %v2522
    %v2591 = vunpack.c.l.b16 %v2523
    %v2592 = vunpack.c.l.b16 %v2524
    %v2593 = vunpack.c.l.b16 %v2525
    %v2594 = vunpack.c.l.b16 %v2526
    %v2595 = vunpack.c.l.b16 %v2527
    %v2596 = vunpack.c.l.b16 %v2528
    %v2597 = vunpack.c.l.b16 %v2529
    %v2598 = vunpack.c.l.b16 %v2530
    %v2599 = vunpack.c.l.b16 %v2531
    %v2600 = vunpack.c.l.b16 %v2532
    %v2601 = vunpack.c.l.b16 %v2533
    %v2602 = vunpack.c.l.b16 %v2534
    %v2603 = vunpack.c.l.b16 %v2535
    %v2604 = vunpack.c.l.b16 %v2536
    %v2605 = vunpack.c.l.b16 %v2537
    %v2606 = vunpack.c.l.b16 %v2538
    %v2607 = vunpack.c.l.b16 %v2539
    %v2608 = vunpack.c.l.b16 %v2540
    %v2609 = vunpack.c.l.b16 %v2541
    %v2610 = vunpack.c.l.b16 %v2542
    %v2611 = vunpack.c.l.b16 %v2543
    %v2612 = vpack.c.b16 %v2581, %v2580
    %v2613 = vpack.c.b16 %v2583, %v2582
    %v2614 = vpack.c.b16 %v2585, %v2584
    %v2615 = vpack.c.b16 %v2587, %v2586
    %v2616 = vpack.c.b16 %v2589, %v2588
    %v2617 = vpack.c.b16 %v2591, %v2590
    %v2618 = vpack.c.b16 %v2593, %v2592
    %v2619 = vpack.c.b16 %v2595, %v2594
    %v2620 = vpack.c.b16 %v2597, %v2596
    %v2621 = vpack.c.b16 %v2599, %v2598
    %v2622 = vpack.c.b16 %v2601, %v2600
    %v2623 = vpack.c.b16 %v2603, %v2602
    %v2624 = vpack.c.b16 %v2605, %v2604
    %v2625 = vpack.c.b16 %v2607, %v2606
    %v2626 = vpack.c.b16 %v2609, %v2608
    %v2627 = vpack.c.b16 %v2611, %v2610
    %2644 = vmatpush.bf16.msra.mxu0 %v2619
    %2645 = vmatpush.bf16.msra.mxu0 %v2618
    %2646 = vmatpush.bf16.msra.mxu0 %v2617
    %2647 = vmatpush.bf16.msra.mxu0 %v2616
    %2648 = vmatpush.bf16.msra.mxu0 %v2615
    %2649 = vmatpush.bf16.msra.mxu0 %v2614
    %2650 = vmatpush.bf16.msra.mxu0 %v2613
    %2651 = vmatpush.bf16.msra.mxu0 %v2612
    %2652 = vmatmul.bf16.gmra.mxu0 %v2510
    %v2653 = vpop.f32.mrf.mxu0
    %v2654 = vadd.f32 %v2546, %v2653
    %v2655 = vpop.f32.mrf.mxu0
    %v2656 = vadd.f32 %v2546, %v2655
    %2657 = vdwg.mxu0
    %2658 = vmatpush.bf16.msra.mxu0 %v2627
    %2659 = vmatpush.bf16.msra.mxu0 %v2626
    %2660 = vmatpush.bf16.msra.mxu0 %v2625
    %2661 = vmatpush.bf16.msra.mxu0 %v2624
    %2662 = vmatpush.bf16.msra.mxu0 %v2623
    %2663 = vmatpush.bf16.msra.mxu0 %v2622
    %2664 = vmatpush.bf16.msra.mxu0 %v2621
    %2665 = vmatpush.bf16.msra.mxu0 %v2620
    %2666 = vmatmul.bf16.gmra.mxu0 %v2511
    %v2667 = vpop.f32.mrf.mxu0
    %v2668 = vadd.f32 %v2654, %v2667
    %v2669 = vpop.f32.mrf.mxu0
    %v2670 = vadd.f32 %v2656, %v2669
    %2671 = vdwg.mxu0
    %2672 = vmax.xlane.f32.xlu0 %v2668
    %v2673 = vpop.xlane.xlu0 %2672
    %2674 = vmax.xlane.f32.xlu0 %v2670
    %v2675 = vpop.xlane.xlu0 %2674
    %v2676 = vsub.f32 %v2668, %v2673
    %v2677 = vsub.f32 %v2670, %v2675
    %v2678 = vmul.f32 %v2676, 1.442695
    %v2679 = vpow.pop %v2678
    %v2680 = vmul.f32 %v2677, 1.442695
    %v2681 = vpow.pop %v2680
    %2682 = vadd.xlane.f32.xlu0 %v2679
    %v2683 = vpop.xlane.xlu0 %2682
    %2684 = vadd.xlane.f32.xlu0 %v2681
    %v2685 = vpop.xlane.xlu0 %2684
    %v2686 = vlog2.pop %v2683
    %v2687 = vmul.f32 %v2686, 0.6931472
    %v2688 = vlog2.pop %v2685
    %v2689 = vmul.f32 %v2688, 0.6931472
    %v2690 = vsub.f32 %v2676, %v2687
    %v2691 = vsub.f32 %v2677, %v2689
    %2692 = vst [vmem:[%s6] sm:$0xff] %v2690
    %2693 = vst [vmem:[%s6 + $0x8] sm:$0xff] %v2691
    // Predicated region
    $region26: #{two_layer_model_forward.2} parent=1 // pred_check
      _
    $region27: #{two_layer_model_forward.2} parent=1 // pred_check_branch
      %2695 = sbr.rel (0) target = $region29
    $region28: #{two_layer_model_forward.2} parent=1 // pred_region
      _
    $region29: #{two_layer_model_forward.2} parent=1 // pred_fallthru
      _
    // Predicated region
    $region30: #{two_layer_model_forward.2} parent=1 // pred_check
      _
    $region31: #{two_layer_model_forward.2} parent=1 // pred_check_branch
      %2697 = sbr.rel (0) target = $region33
    $region32: #{two_layer_model_forward.2} parent=1 // pred_region
      _
    $region33: #{two_layer_model_forward.2} parent=1 // pred_fallthru
      _
    %2698 = vsyncpa [#allocation8], 1

</llo_original>
